<compile_context>
chip_gen: v7x
topology: tpu7x:2x2x1
jax: 0.10.0
libtpu: 0.0.40
codegen_flags: <defaults>
</compile_context>

<pallas_src>
import functools

import jax
import jax.numpy as jnp
from jax.experimental import pallas as pl
from jax.experimental.pallas import tpu as pltpu


def _round_up(x, m):
    return (x + m - 1) // m * m


# ----------------------------------------------------------------------------
# Pallas kernel: fused pad + im2col + single stacked-K conv-as-GEMM + bias.
# ----------------------------------------------------------------------------
def _fused_conv_kernel(x_ref, w_ref, b_ref, o_ref, xpad_ref, xstack_ref, *, h, w):
    # x_ref:      (Nb, Cin, H*W)         raw images, channel-major, unpadded.
    # w_ref:      (Cout_pad, 9*Cin_pad)  stacked weights (tap-major, then chan).
    # b_ref:      (Cout_pad, 1)          bias (f32).
    # o_ref:      (Nb, Cout_pad, Mq_pad) output in padded-width coords, M on lanes.
    # xpad_ref:   (Cin_pad, Lp_pad)      VMEM scratch: zero-padded image strip.
    # xstack_ref: (9*Cin_pad, Mq_pad)    VMEM scratch: stacked im2col strip.
    nb, cin, _ = x_ref.shape
    cin_pad, lp_pad = xpad_ref.shape
    k9, mq_pad = xstack_ref.shape
    assert k9 == 9 * cin_pad
    wp = w + 2                                   # pad=1 each side, stride=1
    strip_dt = xpad_ref.dtype
    stack_dt = xstack_ref.dtype

    # Tap lane-offsets in padded-width coordinates; order (kh, kw) matches the
    # stacked-weight layout built in the wrapper.
    taps = tuple(kh * wp + kw for kh in range(3) for kw in range(3))

    # Zero the padded strip once per grid step: borders / guard / padded
    # channels stay zero, data rows are overwritten per image below.
    # Re-zeroing per step keeps correctness under megacore grid sharding
    # (no reliance on cross-step scratch persistence).
    xpad_ref[...] = jnp.zeros_like(xpad_ref)

    for b in range(nb):                          # static: Nb is small
        img = x_ref[b]                           # (Cin, H*W)

        # Fused spatial padding: scatter image rows into the zero strip.
        for hh in range(h):
            col0 = (hh + 1) * wp + 1
            xpad_ref[0:cin, col0:col0 + w] = (
                img[:, hh * w:(hh + 1) * w].astype(strip_dt))

        # Build the stacked im2col strip: 9 static lane shifts (XLU), each
        # stored as an aligned full-width slab of the stacked scratch.
        for t, off in enumerate(taps):
            if off == 0:
                xs = xpad_ref[:, 0:mq_pad]
            else:
                # result[q] = xpad[q + off]; the lp_pad guard guarantees no
                # wraparound reaches kept outputs.
                xs = pltpu.roll(xpad_ref[...], shift=lp_pad - off, axis=1)[:, 0:mq_pad]
            xstack_ref[t * cin_pad:(t + 1) * cin_pad, :] = xs.astype(stack_dt)

        # ONE stacked-K MXU matmul per image:
        #   (Cout_pad, 9*Cin_pad) @ (9*Cin_pad, Mq_pad), f32 accumulation.
        # TODO(synk): tile mq_pad with an inner fori_loop once
        # cout_pad * mq_pad * 4 B approaches the vreg file (large Cout).
        acc = jnp.dot(w_ref[...], xstack_ref[...],
                      preferred_element_type=jnp.float32)
        o_ref[b] = (acc + b_ref[...]).astype(o_ref.dtype)


def conv2d_pallas(x, weight, bias, *, compute_dtype=jnp.bfloat16, nb=None):
    """Conv2d, stride=1, padding=1 ('same' 3x3). x NCHW, weight OIHW."""
    N, Cin, H, W = x.shape
    Cout, Cin_w, KH, KW = weight.shape
    assert Cin_w == Cin and KH == 3 and KW == 3, "kernel supports 3x3, pad=1, stride=1"

    dt = jnp.dtype(compute_dtype if compute_dtype is not None else x.dtype)
    # bf16 vregs pack (16,128): pad channels to 16 when computing in 16-bit,
    # 8 in f32, so stacked-strip groups / weight tiles stay full.
    gran = 16 if dt.itemsize < 4 else 8
    cin_pad = _round_up(Cin, gran)
    cout_pad = _round_up(Cout, gran)

    Wp, Hp = W + 2, H + 2
    mq = H * Wp                                  # valid rows, padded width
    mq_pad = _round_up(mq, 128)                  # lane-dense output stores
    lp = Hp * Wp
    # Guard so every tap read (offset <= 2*Wp+2) from any q < mq_pad stays in
    # bounds of the zero-extended strip (no roll wraparound into kept outputs).
    lp_pad = _round_up(max(lp, mq_pad + 2 * Wp + 2), 128)
    k9 = KH * KW * cin_pad

    # Stacked weights: W2[co, t*cin_pad + ci] = weight[co, ci, kh, kw], t = kh*3+kw.
    wpad = jnp.pad(weight, ((0, cout_pad - Cout), (0, cin_pad - Cin), (0, 0), (0, 0)))
    w2 = jnp.transpose(wpad, (0, 2, 3, 1)).reshape(cout_pad, k9).astype(dt)
    b2 = jnp.pad(bias, (0, cout_pad - Cout)).reshape(cout_pad, 1).astype(jnp.float32)

    # Batch images per grid step (large DMAs, amortized per-step overhead).
    if nb is None:
        per_img = Cin * H * W * x.dtype.itemsize
        cap = max(1, (2 << 20) // max(per_img, 1))
        nb = max(d for d in range(1, N + 1) if N % d == 0 and d <= cap)
    assert N % nb == 0

    # Free view-reshape only: no wrapper-side pad / cast / transpose of x
    # (spatial padding and the compute-dtype cast are fused into the kernel).
    xf = x.reshape(N, Cin, H * W)

    kernel = functools.partial(_fused_conv_kernel, h=H, w=W)

    out = pl.pallas_call(
        kernel,
        out_shape=jax.ShapeDtypeStruct((N, cout_pad, mq_pad), x.dtype),
        grid_spec=pltpu.PrefetchScalarGridSpec(
            num_scalar_prefetch=0,
            grid=(N // nb,),
            in_specs=[
                pl.BlockSpec((nb, Cin, H * W), lambda n: (n, 0, 0)),
                pl.BlockSpec((cout_pad, k9), lambda n: (0, 0)),
                pl.BlockSpec((cout_pad, 1), lambda n: (0, 0)),
            ],
            out_specs=pl.BlockSpec((nb, cout_pad, mq_pad), lambda n: (n, 0, 0)),
            scratch_shapes=[
                pltpu.VMEM((cin_pad, lp_pad), x.dtype),   # padded image strip
                pltpu.VMEM((k9, mq_pad), dt),             # stacked im2col strip
            ],
        ),
        compiler_params=pltpu.CompilerParams(
            dimension_semantics=("parallel",),            # shards batch across TCs
            vmem_limit_bytes=64 * 1024 * 1024,            # room for batched blocks
        ),
    )(xf, w2, b2)

    # (N, Cout_pad, Mq_pad) is already channel-major -> un-pad width/channels.
    # TODO(synk): consumers that accept the padded (Cout_pad, H*Wp) layout can
    # skip this slice and save one output HBM round trip.
    out = out[:, :Cout, :mq].reshape(N, Cout, H, Wp)[:, :, :, :W]
    return out


_conv2d_pallas_jit = jax.jit(conv2d_pallas, static_argnames=("compute_dtype", "nb"))


# ----------------------------------------------------------------------------
# Hook-capable "module" + BaseTracker port (Python glue, mirrors nn.Module API)
# ----------------------------------------------------------------------------
class _HookHandle:
    def __init__(self, hooks, key):
        self._hooks, self._key = hooks, key

    def remove(self):
        self._hooks.pop(self._key, None)


class PallasConv2d:
    """Minimal stand-in for nn.Conv2d whose forward runs the Pallas kernel."""

    def __init__(self, weight, bias, compute_dtype=jnp.bfloat16):
        self.weight = weight
        self.bias = bias
        self.compute_dtype = compute_dtype        # bf16 default (v6e/v7x native)
        self._forward_hooks = {}
        self._next_key = 0

    def register_forward_hook(self, fn):
        key = self._next_key
        self._next_key += 1
        self._forward_hooks[key] = fn
        return _HookHandle(self._forward_hooks, key)

    def __call__(self, x):
        out = _conv2d_pallas_jit(x, self.weight, self.bias,
                                 compute_dtype=self.compute_dtype)
        for hook in list(self._forward_hooks.values()):
            hook(self, (x,), out)
        return out


class BaseTracker:
    """Port of torchprune BaseTracker: tracks a module via forward hooks."""

    def __init__(self, module):
        self.module = module
        self._hook_handle = None
        self._backward_hook_handle = None

    def enable_tracker(self):
        self._set_tracking(True)

    def disable_tracker(self):
        self._set_tracking(False)

    def _set_tracking(self, tracking_mode=True):
        if tracking_mode and self._hook_handle is None:
            self._hook_handle = self.module.register_forward_hook(self._hook)
            # TODO(synk): weight.register_hook (grad hook) has no clean Pallas
            # equivalent without a custom_vjp on the conv; omitted.
            self._backward_hook_handle = None
        elif tracking_mode is False and self._hook_handle is not None:
            self._hook_handle.remove()
            self._hook_handle = None
            self._backward_hook_handle = None

    def forward(self, x):
        """Fake forward function (matches PyTorch semantics: returns None)."""
        return None

    def __call__(self, x):
        return self.forward(x)

    def reset(self):
        raise NotImplementedError

    def _hook(self, module, ins, outs):
        raise NotImplementedError

    def _backward_hook(self, grad):
        raise NotImplementedError


class _DemoTracker(BaseTracker):
    """Tiny concrete tracker: records the last output seen via the hook."""

    def __init__(self, module):
        super().__init__(module)
        self.reset()

    def reset(self):
        self.last_out = None

    def _hook(self, module, ins, outs):
        self.last_out = outs

    def _backward_hook(self, grad):
        pass


# ----------------------------------------------------------------------------
if __name__ == "__main__":
    key = jax.random.PRNGKey(0)
    kx, kw, kb = jax.random.split(key, 3)

    N, Cin, H, W = 2, 4, 16, 16
    Cout, KH, KW = 8, 3, 3

    x = jax.random.normal(kx, (N, Cin, H, W), dtype=jnp.float32)
    weight = jax.random.normal(kw, (Cout, Cin, KH, KW), dtype=jnp.float32) * 0.1
    bias = jax.random.normal(kb, (Cout,), dtype=jnp.float32) * 0.1

    # f32 compute path: exact check against the XLA reference conv.
    module = PallasConv2d(weight, bias, compute_dtype=jnp.float32)
    tracker = _DemoTracker(module)
    tracker.enable_tracker()

    # BaseTracker.forward is a fake forward -> returns None, as in PyTorch.
    assert tracker(x) is None

    # Running the tracked module triggers the forward hook (Pallas conv).
    out = module(x)
    out = jax.block_until_ready(out)
    assert tracker.last_out is not None

    ref = jax.lax.conv_general_dilated(
        x, weight, window_strides=(1, 1), padding=((1, 1), (1, 1)),
        dimension_numbers=("NCHW", "OIHW", "NCHW"),
    ) + bias[None, :, None, None]
    assert out.shape == (N, Cout, H, W)
    assert jnp.allclose(out, ref, atol=2e-3, rtol=2e-3)

    # Default bf16 compute path (review: v6e/v7x default); f32 accumulation.
    module_bf16 = PallasConv2d(weight, bias)          # compute_dtype=bf16 default
    out_bf16 = jax.block_until_ready(module_bf16(x))
    x_bf = x.astype(jnp.bfloat16).astype(jnp.float32)
    w_bf = weight.astype(jnp.bfloat16).astype(jnp.float32)
    ref_bf = jax.lax.conv_general_dilated(
        x_bf, w_bf, window_strides=(1, 1), padding=((1, 1), (1, 1)),
        dimension_numbers=("NCHW", "OIHW", "NCHW"),
    ) + bias[None, :, None, None]
    assert jnp.allclose(out_bf16, ref_bf, atol=3e-2, rtol=3e-2)

    tracker.disable_tracker()
    print("KERNEL_OK")
</pallas_src>

<mosaic_0001>
module attributes {stable_mosaic.version = 11 : i64} {
  func.func @_fused_conv_kernel(%arg0: i32, %arg1: memref<2x4x256xf32, #tpu.memory_space<vmem>>, %arg2: memref<8x72xf32, #tpu.memory_space<vmem>>, %arg3: memref<8x1xf32, #tpu.memory_space<vmem>>, %arg4: memref<2x8x384xf32, #tpu.memory_space<vmem>>, %arg5: memref<8x512xf32, #tpu.memory_space<vmem>>, %arg6: memref<72x384xf32, #tpu.memory_space<vmem>>) attributes {dimension_semantics = [#tpu.dimension_semantics<parallel>], iteration_bounds = array<i64: 1>, scalar_prefetch = 0 : i64, scratch_operands = 2 : i64, tpu.core_type = #tpu.core_type<tc>, window_params = [{transform_indices = @transform_0, window_bounds = array<i64: 2, 4, 256>}, {pipeline_mode = #tpu.pipeline_mode<synchronous>, transform_indices = @transform_1, window_bounds = array<i64: 8, 72>}, {pipeline_mode = #tpu.pipeline_mode<synchronous>, transform_indices = @transform_2, window_bounds = array<i64: 8, 1>}, {transform_indices = @transform_3, window_bounds = array<i64: 2, 8, 384>}]} {
    %cst = arith.constant 0.000000e+00 : f32
    %0 = vector.broadcast %cst : f32 to vector<8x512xf32>
    %c0 = arith.constant 0 : index
    %c0_0 = arith.constant 0 : index
    %1 = vector.load %arg5[%c0, %c0_0] : memref<8x512xf32, #tpu.memory_space<vmem>>, vector<8x512xf32>
    tpu.vector_store %arg5[%c0, %c0_0], %0 {strides = array<i32>} : memref<8x512xf32, #tpu.memory_space<vmem>>, vector<8x512xf32>,
    %c0_1 = arith.constant 0 : index
    %c0_2 = arith.constant 0 : index
    %c0_3 = arith.constant 0 : index
    %2 = vector.load %arg1[%c0_1, %c0_2, %c0_3] : memref<2x4x256xf32, #tpu.memory_space<vmem>>, vector<1x4x256xf32>
    %3 = vector.shape_cast %2 : vector<1x4x256xf32> to vector<4x256xf32>
    %4 = vector.extract_strided_slice %3 {offsets = [0, 0], sizes = [4, 16], strides = [1, 1]} : vector<4x256xf32> to vector<4x16xf32>
    %c0_4 = arith.constant 0 : index
    %c19 = arith.constant 19 : index
    %5 = vector.load %arg5[%c0_4, %c19] : memref<8x512xf32, #tpu.memory_space<vmem>>, vector<4x16xf32>
    tpu.vector_store %arg5[%c0_4, %c19], %4 {strides = array<i32>} : memref<8x512xf32, #tpu.memory_space<vmem>>, vector<4x16xf32>,
    %6 = vector.extract_strided_slice %3 {offsets = [0, 16], sizes = [4, 16], strides = [1, 1]} : vector<4x256xf32> to vector<4x16xf32>
    %c0_5 = arith.constant 0 : index
    %c37 = arith.constant 37 : index
    %7 = vector.load %arg5[%c0_5, %c37] : memref<8x512xf32, #tpu.memory_space<vmem>>, vector<4x16xf32>
    tpu.vector_store %arg5[%c0_5, %c37], %6 {strides = array<i32>} : memref<8x512xf32, #tpu.memory_space<vmem>>, vector<4x16xf32>,
    %8 = vector.extract_strided_slice %3 {offsets = [0, 32], sizes = [4, 16], strides = [1, 1]} : vector<4x256xf32> to vector<4x16xf32>
    %c0_6 = arith.constant 0 : index
    %c55 = arith.constant 55 : index
    %9 = vector.load %arg5[%c0_6, %c55] : memref<8x512xf32, #tpu.memory_space<vmem>>, vector<4x16xf32>
    tpu.vector_store %arg5[%c0_6, %c55], %8 {strides = array<i32>} : memref<8x512xf32, #tpu.memory_space<vmem>>, vector<4x16xf32>,
    %10 = vector.extract_strided_slice %3 {offsets = [0, 48], sizes = [4, 16], strides = [1, 1]} : vector<4x256xf32> to vector<4x16xf32>
    %c0_7 = arith.constant 0 : index
    %c73 = arith.constant 73 : index
    %11 = vector.load %arg5[%c0_7, %c73] : memref<8x512xf32, #tpu.memory_space<vmem>>, vector<4x16xf32>
    tpu.vector_store %arg5[%c0_7, %c73], %10 {strides = array<i32>} : memref<8x512xf32, #tpu.memory_space<vmem>>, vector<4x16xf32>,
    %12 = vector.extract_strided_slice %3 {offsets = [0, 64], sizes = [4, 16], strides = [1, 1]} : vector<4x256xf32> to vector<4x16xf32>
    %c0_8 = arith.constant 0 : index
    %c91 = arith.constant 91 : index
    %13 = vector.load %arg5[%c0_8, %c91] : memref<8x512xf32, #tpu.memory_space<vmem>>, vector<4x16xf32>
    tpu.vector_store %arg5[%c0_8, %c91], %12 {strides = array<i32>} : memref<8x512xf32, #tpu.memory_space<vmem>>, vector<4x16xf32>,
    %14 = vector.extract_strided_slice %3 {offsets = [0, 80], sizes = [4, 16], strides = [1, 1]} : vector<4x256xf32> to vector<4x16xf32>
    %c0_9 = arith.constant 0 : index
    %c109 = arith.constant 109 : index
    %15 = vector.load %arg5[%c0_9, %c109] : memref<8x512xf32, #tpu.memory_space<vmem>>, vector<4x16xf32>
    tpu.vector_store %arg5[%c0_9, %c109], %14 {strides = array<i32>} : memref<8x512xf32, #tpu.memory_space<vmem>>, vector<4x16xf32>,
    %16 = vector.extract_strided_slice %3 {offsets = [0, 96], sizes = [4, 16], strides = [1, 1]} : vector<4x256xf32> to vector<4x16xf32>
    %c0_10 = arith.constant 0 : index
    %c127 = arith.constant 127 : index
    %17 = vector.load %arg5[%c0_10, %c127] : memref<8x512xf32, #tpu.memory_space<vmem>>, vector<4x16xf32>
    tpu.vector_store %arg5[%c0_10, %c127], %16 {strides = array<i32>} : memref<8x512xf32, #tpu.memory_space<vmem>>, vector<4x16xf32>,
    %18 = vector.extract_strided_slice %3 {offsets = [0, 112], sizes = [4, 16], strides = [1, 1]} : vector<4x256xf32> to vector<4x16xf32>
    %c0_11 = arith.constant 0 : index
    %c145 = arith.constant 145 : index
    %19 = vector.load %arg5[%c0_11, %c145] : memref<8x512xf32, #tpu.memory_space<vmem>>, vector<4x16xf32>
    tpu.vector_store %arg5[%c0_11, %c145], %18 {strides = array<i32>} : memref<8x512xf32, #tpu.memory_space<vmem>>, vector<4x16xf32>,
    %20 = vector.extract_strided_slice %3 {offsets = [0, 128], sizes = [4, 16], strides = [1, 1]} : vector<4x256xf32> to vector<4x16xf32>
    %c0_12 = arith.constant 0 : index
    %c163 = arith.constant 163 : index
    %21 = vector.load %arg5[%c0_12, %c163] : memref<8x512xf32, #tpu.memory_space<vmem>>, vector<4x16xf32>
    tpu.vector_store %arg5[%c0_12, %c163], %20 {strides = array<i32>} : memref<8x512xf32, #tpu.memory_space<vmem>>, vector<4x16xf32>,
    %22 = vector.extract_strided_slice %3 {offsets = [0, 144], sizes = [4, 16], strides = [1, 1]} : vector<4x256xf32> to vector<4x16xf32>
    %c0_13 = arith.constant 0 : index
    %c181 = arith.constant 181 : index
    %23 = vector.load %arg5[%c0_13, %c181] : memref<8x512xf32, #tpu.memory_space<vmem>>, vector<4x16xf32>
    tpu.vector_store %arg5[%c0_13, %c181], %22 {strides = array<i32>} : memref<8x512xf32, #tpu.memory_space<vmem>>, vector<4x16xf32>,
    %24 = vector.extract_strided_slice %3 {offsets = [0, 160], sizes = [4, 16], strides = [1, 1]} : vector<4x256xf32> to vector<4x16xf32>
    %c0_14 = arith.constant 0 : index
    %c199 = arith.constant 199 : index
    %25 = vector.load %arg5[%c0_14, %c199] : memref<8x512xf32, #tpu.memory_space<vmem>>, vector<4x16xf32>
    tpu.vector_store %arg5[%c0_14, %c199], %24 {strides = array<i32>} : memref<8x512xf32, #tpu.memory_space<vmem>>, vector<4x16xf32>,
    %26 = vector.extract_strided_slice %3 {offsets = [0, 176], sizes = [4, 16], strides = [1, 1]} : vector<4x256xf32> to vector<4x16xf32>
    %c0_15 = arith.constant 0 : index
    %c217 = arith.constant 217 : index
    %27 = vector.load %arg5[%c0_15, %c217] : memref<8x512xf32, #tpu.memory_space<vmem>>, vector<4x16xf32>
    tpu.vector_store %arg5[%c0_15, %c217], %26 {strides = array<i32>} : memref<8x512xf32, #tpu.memory_space<vmem>>, vector<4x16xf32>,
    %28 = vector.extract_strided_slice %3 {offsets = [0, 192], sizes = [4, 16], strides = [1, 1]} : vector<4x256xf32> to vector<4x16xf32>
    %c0_16 = arith.constant 0 : index
    %c235 = arith.constant 235 : index
    %29 = vector.load %arg5[%c0_16, %c235] : memref<8x512xf32, #tpu.memory_space<vmem>>, vector<4x16xf32>
    tpu.vector_store %arg5[%c0_16, %c235], %28 {strides = array<i32>} : memref<8x512xf32, #tpu.memory_space<vmem>>, vector<4x16xf32>,
    %30 = vector.extract_strided_slice %3 {offsets = [0, 208], sizes = [4, 16], strides = [1, 1]} : vector<4x256xf32> to vector<4x16xf32>
    %c0_17 = arith.constant 0 : index
    %c253 = arith.constant 253 : index
    %31 = vector.load %arg5[%c0_17, %c253] : memref<8x512xf32, #tpu.memory_space<vmem>>, vector<4x16xf32>
    tpu.vector_store %arg5[%c0_17, %c253], %30 {strides = array<i32>} : memref<8x512xf32, #tpu.memory_space<vmem>>, vector<4x16xf32>,
    %32 = vector.extract_strided_slice %3 {offsets = [0, 224], sizes = [4, 16], strides = [1, 1]} : vector<4x256xf32> to vector<4x16xf32>
    %c0_18 = arith.constant 0 : index
    %c271 = arith.constant 271 : index
    %33 = vector.load %arg5[%c0_18, %c271] : memref<8x512xf32, #tpu.memory_space<vmem>>, vector<4x16xf32>
    tpu.vector_store %arg5[%c0_18, %c271], %32 {strides = array<i32>} : memref<8x512xf32, #tpu.memory_space<vmem>>, vector<4x16xf32>,
    %34 = vector.extract_strided_slice %3 {offsets = [0, 240], sizes = [4, 16], strides = [1, 1]} : vector<4x256xf32> to vector<4x16xf32>
    %c0_19 = arith.constant 0 : index
    %c289 = arith.constant 289 : index
    %35 = vector.load %arg5[%c0_19, %c289] : memref<8x512xf32, #tpu.memory_space<vmem>>, vector<4x16xf32>
    tpu.vector_store %arg5[%c0_19, %c289], %34 {strides = array<i32>} : memref<8x512xf32, #tpu.memory_space<vmem>>, vector<4x16xf32>,
    %c0_20 = arith.constant 0 : index
    %c0_21 = arith.constant 0 : index
    %36 = vector.load %arg5[%c0_20, %c0_21] : memref<8x512xf32, #tpu.memory_space<vmem>>, vector<8x384xf32>
    %c0_22 = arith.constant 0 : index
    %c0_23 = arith.constant 0 : index
    %37 = vector.load %arg6[%c0_22, %c0_23] : memref<72x384xf32, #tpu.memory_space<vmem>>, vector<8x384xf32>
    tpu.vector_store %arg6[%c0_22, %c0_23], %36 {strides = array<i32>} : memref<72x384xf32, #tpu.memory_space<vmem>>, vector<8x384xf32>,
    %c0_24 = arith.constant 0 : index
    %c0_25 = arith.constant 0 : index
    %38 = vector.load %arg5[%c0_24, %c0_25] : memref<8x512xf32, #tpu.memory_space<vmem>>, vector<8x512xf32>
    %c511_i32 = arith.constant 511 : i32
    %39 = tpu.dynamic_rotate %38 by %c511_i32 dim 1 : vector<8x512xf32>, i32 -> vector<8x512xf32>
    %40 = vector.extract_strided_slice %39 {offsets = [0, 0], sizes = [8, 384], strides = [1, 1]} : vector<8x512xf32> to vector<8x384xf32>
    %c8 = arith.constant 8 : index
    %c0_26 = arith.constant 0 : index
    %41 = vector.load %arg6[%c8, %c0_26] : memref<72x384xf32, #tpu.memory_space<vmem>>, vector<8x384xf32>
    tpu.vector_store %arg6[%c8, %c0_26], %40 {strides = array<i32>} : memref<72x384xf32, #tpu.memory_space<vmem>>, vector<8x384xf32>,
    %c0_27 = arith.constant 0 : index
    %c0_28 = arith.constant 0 : index
    %42 = vector.load %arg5[%c0_27, %c0_28] : memref<8x512xf32, #tpu.memory_space<vmem>>, vector<8x512xf32>
    %c510_i32 = arith.constant 510 : i32
    %43 = tpu.dynamic_rotate %42 by %c510_i32 dim 1 : vector<8x512xf32>, i32 -> vector<8x512xf32>
    %44 = vector.extract_strided_slice %43 {offsets = [0, 0], sizes = [8, 384], strides = [1, 1]} : vector<8x512xf32> to vector<8x384xf32>
    %c16 = arith.constant 16 : index
    %c0_29 = arith.constant 0 : index
    %45 = vector.load %arg6[%c16, %c0_29] : memref<72x384xf32, #tpu.memory_space<vmem>>, vector<8x384xf32>
    tpu.vector_store %arg6[%c16, %c0_29], %44 {strides = array<i32>} : memref<72x384xf32, #tpu.memory_space<vmem>>, vector<8x384xf32>,
    %c0_30 = arith.constant 0 : index
    %c0_31 = arith.constant 0 : index
    %46 = vector.load %arg5[%c0_30, %c0_31] : memref<8x512xf32, #tpu.memory_space<vmem>>, vector<8x512xf32>
    %c494_i32 = arith.constant 494 : i32
    %47 = tpu.dynamic_rotate %46 by %c494_i32 dim 1 : vector<8x512xf32>, i32 -> vector<8x512xf32>
    %48 = vector.extract_strided_slice %47 {offsets = [0, 0], sizes = [8, 384], strides = [1, 1]} : vector<8x512xf32> to vector<8x384xf32>
    %c24 = arith.constant 24 : index
    %c0_32 = arith.constant 0 : index
    %49 = vector.load %arg6[%c24, %c0_32] : memref<72x384xf32, #tpu.memory_space<vmem>>, vector<8x384xf32>
    tpu.vector_store %arg6[%c24, %c0_32], %48 {strides = array<i32>} : memref<72x384xf32, #tpu.memory_space<vmem>>, vector<8x384xf32>,
    %c0_33 = arith.constant 0 : index
    %c0_34 = arith.constant 0 : index
    %50 = vector.load %arg5[%c0_33, %c0_34] : memref<8x512xf32, #tpu.memory_space<vmem>>, vector<8x512xf32>
    %c493_i32 = arith.constant 493 : i32
    %51 = tpu.dynamic_rotate %50 by %c493_i32 dim 1 : vector<8x512xf32>, i32 -> vector<8x512xf32>
    %52 = vector.extract_strided_slice %51 {offsets = [0, 0], sizes = [8, 384], strides = [1, 1]} : vector<8x512xf32> to vector<8x384xf32>
    %c32 = arith.constant 32 : index
    %c0_35 = arith.constant 0 : index
    %53 = vector.load %arg6[%c32, %c0_35] : memref<72x384xf32, #tpu.memory_space<vmem>>, vector<8x384xf32>
    tpu.vector_store %arg6[%c32, %c0_35], %52 {strides = array<i32>} : memref<72x384xf32, #tpu.memory_space<vmem>>, vector<8x384xf32>,
    %c0_36 = arith.constant 0 : index
    %c0_37 = arith.constant 0 : index
    %54 = vector.load %arg5[%c0_36, %c0_37] : memref<8x512xf32, #tpu.memory_space<vmem>>, vector<8x512xf32>
    %c492_i32 = arith.constant 492 : i32
    %55 = tpu.dynamic_rotate %54 by %c492_i32 dim 1 : vector<8x512xf32>, i32 -> vector<8x512xf32>
    %56 = vector.extract_strided_slice %55 {offsets = [0, 0], sizes = [8, 384], strides = [1, 1]} : vector<8x512xf32> to vector<8x384xf32>
    %c40 = arith.constant 40 : index
    %c0_38 = arith.constant 0 : index
    %57 = vector.load %arg6[%c40, %c0_38] : memref<72x384xf32, #tpu.memory_space<vmem>>, vector<8x384xf32>
    tpu.vector_store %arg6[%c40, %c0_38], %56 {strides = array<i32>} : memref<72x384xf32, #tpu.memory_space<vmem>>, vector<8x384xf32>,
    %c0_39 = arith.constant 0 : index
    %c0_40 = arith.constant 0 : index
    %58 = vector.load %arg5[%c0_39, %c0_40] : memref<8x512xf32, #tpu.memory_space<vmem>>, vector<8x512xf32>
    %c476_i32 = arith.constant 476 : i32
    %59 = tpu.dynamic_rotate %58 by %c476_i32 dim 1 : vector<8x512xf32>, i32 -> vector<8x512xf32>
    %60 = vector.extract_strided_slice %59 {offsets = [0, 0], sizes = [8, 384], strides = [1, 1]} : vector<8x512xf32> to vector<8x384xf32>
    %c48 = arith.constant 48 : index
    %c0_41 = arith.constant 0 : index
    %61 = vector.load %arg6[%c48, %c0_41] : memref<72x384xf32, #tpu.memory_space<vmem>>, vector<8x384xf32>
    tpu.vector_store %arg6[%c48, %c0_41], %60 {strides = array<i32>} : memref<72x384xf32, #tpu.memory_space<vmem>>, vector<8x384xf32>,
    %c0_42 = arith.constant 0 : index
    %c0_43 = arith.constant 0 : index
    %62 = vector.load %arg5[%c0_42, %c0_43] : memref<8x512xf32, #tpu.memory_space<vmem>>, vector<8x512xf32>
    %c475_i32 = arith.constant 475 : i32
    %63 = tpu.dynamic_rotate %62 by %c475_i32 dim 1 : vector<8x512xf32>, i32 -> vector<8x512xf32>
    %64 = vector.extract_strided_slice %63 {offsets = [0, 0], sizes = [8, 384], strides = [1, 1]} : vector<8x512xf32> to vector<8x384xf32>
    %c56 = arith.constant 56 : index
    %c0_44 = arith.constant 0 : index
    %65 = vector.load %arg6[%c56, %c0_44] : memref<72x384xf32, #tpu.memory_space<vmem>>, vector<8x384xf32>
    tpu.vector_store %arg6[%c56, %c0_44], %64 {strides = array<i32>} : memref<72x384xf32, #tpu.memory_space<vmem>>, vector<8x384xf32>,
    %c0_45 = arith.constant 0 : index
    %c0_46 = arith.constant 0 : index
    %66 = vector.load %arg5[%c0_45, %c0_46] : memref<8x512xf32, #tpu.memory_space<vmem>>, vector<8x512xf32>
    %c474_i32 = arith.constant 474 : i32
    %67 = tpu.dynamic_rotate %66 by %c474_i32 dim 1 : vector<8x512xf32>, i32 -> vector<8x512xf32>
    %68 = vector.extract_strided_slice %67 {offsets = [0, 0], sizes = [8, 384], strides = [1, 1]} : vector<8x512xf32> to vector<8x384xf32>
    %c64 = arith.constant 64 : index
    %c0_47 = arith.constant 0 : index
    %69 = vector.load %arg6[%c64, %c0_47] : memref<72x384xf32, #tpu.memory_space<vmem>>, vector<8x384xf32>
    tpu.vector_store %arg6[%c64, %c0_47], %68 {strides = array<i32>} : memref<72x384xf32, #tpu.memory_space<vmem>>, vector<8x384xf32>,
    %c0_48 = arith.constant 0 : index
    %c0_49 = arith.constant 0 : index
    %70 = vector.load %arg2[%c0_48, %c0_49] : memref<8x72xf32, #tpu.memory_space<vmem>>, vector<8x72xf32>
    %c0_50 = arith.constant 0 : index
    %c0_51 = arith.constant 0 : index
    %71 = vector.load %arg6[%c0_50, %c0_51] : memref<72x384xf32, #tpu.memory_space<vmem>>, vector<72x384xf32>
    %cst_52 = arith.constant dense<0.000000e+00> : vector<8x384xf32>
    %72 = tpu.matmul %70, %71, %cst_52 {dimension_numbers = #tpu.dot_dimension_numbers<[1], [0], [0], [1], [0, 0, 1, 1], [], []>} : vector<8x72xf32>, vector<72x384xf32>, vector<8x384xf32> -> vector<8x384xf32>
    %c0_53 = arith.constant 0 : index
    %c0_54 = arith.constant 0 : index
    %73 = vector.load %arg3[%c0_53, %c0_54] : memref<8x1xf32, #tpu.memory_space<vmem>>, vector<8x1xf32>
    %74 = vector.broadcast %73 : vector<8x1xf32> to vector<8x384xf32>
    %75 = arith.addf %72, %74 : vector<8x384xf32>
    %c0_55 = arith.constant 0 : index
    %c0_56 = arith.constant 0 : index
    %c0_57 = arith.constant 0 : index
    %76 = vector.load %arg4[%c0_55, %c0_56, %c0_57] : memref<2x8x384xf32, #tpu.memory_space<vmem>>, vector<1x8x384xf32>
    %77 = vector.shape_cast %76 : vector<1x8x384xf32> to vector<8x384xf32>
    %78 = vector.shape_cast %75 : vector<8x384xf32> to vector<1x8x384xf32>
    tpu.vector_store %arg4[%c0_55, %c0_56, %c0_57], %78 {strides = array<i32>} : memref<2x8x384xf32, #tpu.memory_space<vmem>>, vector<1x8x384xf32>,
    %c1 = arith.constant 1 : index
    %c0_58 = arith.constant 0 : index
    %c0_59 = arith.constant 0 : index
    %79 = vector.load %arg1[%c1, %c0_58, %c0_59] : memref<2x4x256xf32, #tpu.memory_space<vmem>>, vector<1x4x256xf32>
    %80 = vector.shape_cast %79 : vector<1x4x256xf32> to vector<4x256xf32>
    %81 = vector.extract_strided_slice %80 {offsets = [0, 0], sizes = [4, 16], strides = [1, 1]} : vector<4x256xf32> to vector<4x16xf32>
    %c0_60 = arith.constant 0 : index
    %c19_61 = arith.constant 19 : index
    %82 = vector.load %arg5[%c0_60, %c19_61] : memref<8x512xf32, #tpu.memory_space<vmem>>, vector<4x16xf32>
    tpu.vector_store %arg5[%c0_60, %c19_61], %81 {strides = array<i32>} : memref<8x512xf32, #tpu.memory_space<vmem>>, vector<4x16xf32>,
    %83 = vector.extract_strided_slice %80 {offsets = [0, 16], sizes = [4, 16], strides = [1, 1]} : vector<4x256xf32> to vector<4x16xf32>
    %c0_62 = arith.constant 0 : index
    %c37_63 = arith.constant 37 : index
    %84 = vector.load %arg5[%c0_62, %c37_63] : memref<8x512xf32, #tpu.memory_space<vmem>>, vector<4x16xf32>
    tpu.vector_store %arg5[%c0_62, %c37_63], %83 {strides = array<i32>} : memref<8x512xf32, #tpu.memory_space<vmem>>, vector<4x16xf32>,
    %85 = vector.extract_strided_slice %80 {offsets = [0, 32], sizes = [4, 16], strides = [1, 1]} : vector<4x256xf32> to vector<4x16xf32>
    %c0_64 = arith.constant 0 : index
    %c55_65 = arith.constant 55 : index
    %86 = vector.load %arg5[%c0_64, %c55_65] : memref<8x512xf32, #tpu.memory_space<vmem>>, vector<4x16xf32>
    tpu.vector_store %arg5[%c0_64, %c55_65], %85 {strides = array<i32>} : memref<8x512xf32, #tpu.memory_space<vmem>>, vector<4x16xf32>,
    %87 = vector.extract_strided_slice %80 {offsets = [0, 48], sizes = [4, 16], strides = [1, 1]} : vector<4x256xf32> to vector<4x16xf32>
    %c0_66 = arith.constant 0 : index
    %c73_67 = arith.constant 73 : index
    %88 = vector.load %arg5[%c0_66, %c73_67] : memref<8x512xf32, #tpu.memory_space<vmem>>, vector<4x16xf32>
    tpu.vector_store %arg5[%c0_66, %c73_67], %87 {strides = array<i32>} : memref<8x512xf32, #tpu.memory_space<vmem>>, vector<4x16xf32>,
    %89 = vector.extract_strided_slice %80 {offsets = [0, 64], sizes = [4, 16], strides = [1, 1]} : vector<4x256xf32> to vector<4x16xf32>
    %c0_68 = arith.constant 0 : index
    %c91_69 = arith.constant 91 : index
    %90 = vector.load %arg5[%c0_68, %c91_69] : memref<8x512xf32, #tpu.memory_space<vmem>>, vector<4x16xf32>
    tpu.vector_store %arg5[%c0_68, %c91_69], %89 {strides = array<i32>} : memref<8x512xf32, #tpu.memory_space<vmem>>, vector<4x16xf32>,
    %91 = vector.extract_strided_slice %80 {offsets = [0, 80], sizes = [4, 16], strides = [1, 1]} : vector<4x256xf32> to vector<4x16xf32>
    %c0_70 = arith.constant 0 : index
    %c109_71 = arith.constant 109 : index
    %92 = vector.load %arg5[%c0_70, %c109_71] : memref<8x512xf32, #tpu.memory_space<vmem>>, vector<4x16xf32>
    tpu.vector_store %arg5[%c0_70, %c109_71], %91 {strides = array<i32>} : memref<8x512xf32, #tpu.memory_space<vmem>>, vector<4x16xf32>,
    %93 = vector.extract_strided_slice %80 {offsets = [0, 96], sizes = [4, 16], strides = [1, 1]} : vector<4x256xf32> to vector<4x16xf32>
    %c0_72 = arith.constant 0 : index
    %c127_73 = arith.constant 127 : index
    %94 = vector.load %arg5[%c0_72, %c127_73] : memref<8x512xf32, #tpu.memory_space<vmem>>, vector<4x16xf32>
    tpu.vector_store %arg5[%c0_72, %c127_73], %93 {strides = array<i32>} : memref<8x512xf32, #tpu.memory_space<vmem>>, vector<4x16xf32>,
    %95 = vector.extract_strided_slice %80 {offsets = [0, 112], sizes = [4, 16], strides = [1, 1]} : vector<4x256xf32> to vector<4x16xf32>
    %c0_74 = arith.constant 0 : index
    %c145_75 = arith.constant 145 : index
    %96 = vector.load %arg5[%c0_74, %c145_75] : memref<8x512xf32, #tpu.memory_space<vmem>>, vector<4x16xf32>
    tpu.vector_store %arg5[%c0_74, %c145_75], %95 {strides = array<i32>} : memref<8x512xf32, #tpu.memory_space<vmem>>, vector<4x16xf32>,
    %97 = vector.extract_strided_slice %80 {offsets = [0, 128], sizes = [4, 16], strides = [1, 1]} : vector<4x256xf32> to vector<4x16xf32>
    %c0_76 = arith.constant 0 : index
    %c163_77 = arith.constant 163 : index
    %98 = vector.load %arg5[%c0_76, %c163_77] : memref<8x512xf32, #tpu.memory_space<vmem>>, vector<4x16xf32>
    tpu.vector_store %arg5[%c0_76, %c163_77], %97 {strides = array<i32>} : memref<8x512xf32, #tpu.memory_space<vmem>>, vector<4x16xf32>,
    %99 = vector.extract_strided_slice %80 {offsets = [0, 144], sizes = [4, 16], strides = [1, 1]} : vector<4x256xf32> to vector<4x16xf32>
    %c0_78 = arith.constant 0 : index
    %c181_79 = arith.constant 181 : index
    %100 = vector.load %arg5[%c0_78, %c181_79] : memref<8x512xf32, #tpu.memory_space<vmem>>, vector<4x16xf32>
    tpu.vector_store %arg5[%c0_78, %c181_79], %99 {strides = array<i32>} : memref<8x512xf32, #tpu.memory_space<vmem>>, vector<4x16xf32>,
    %101 = vector.extract_strided_slice %80 {offsets = [0, 160], sizes = [4, 16], strides = [1, 1]} : vector<4x256xf32> to vector<4x16xf32>
    %c0_80 = arith.constant 0 : index
    %c199_81 = arith.constant 199 : index
    %102 = vector.load %arg5[%c0_80, %c199_81] : memref<8x512xf32, #tpu.memory_space<vmem>>, vector<4x16xf32>
    tpu.vector_store %arg5[%c0_80, %c199_81], %101 {strides = array<i32>} : memref<8x512xf32, #tpu.memory_space<vmem>>, vector<4x16xf32>,
    %103 = vector.extract_strided_slice %80 {offsets = [0, 176], sizes = [4, 16], strides = [1, 1]} : vector<4x256xf32> to vector<4x16xf32>
    %c0_82 = arith.constant 0 : index
    %c217_83 = arith.constant 217 : index
    %104 = vector.load %arg5[%c0_82, %c217_83] : memref<8x512xf32, #tpu.memory_space<vmem>>, vector<4x16xf32>
    tpu.vector_store %arg5[%c0_82, %c217_83], %103 {strides = array<i32>} : memref<8x512xf32, #tpu.memory_space<vmem>>, vector<4x16xf32>,
    %105 = vector.extract_strided_slice %80 {offsets = [0, 192], sizes = [4, 16], strides = [1, 1]} : vector<4x256xf32> to vector<4x16xf32>
    %c0_84 = arith.constant 0 : index
    %c235_85 = arith.constant 235 : index
    %106 = vector.load %arg5[%c0_84, %c235_85] : memref<8x512xf32, #tpu.memory_space<vmem>>, vector<4x16xf32>
    tpu.vector_store %arg5[%c0_84, %c235_85], %105 {strides = array<i32>} : memref<8x512xf32, #tpu.memory_space<vmem>>, vector<4x16xf32>,
    %107 = vector.extract_strided_slice %80 {offsets = [0, 208], sizes = [4, 16], strides = [1, 1]} : vector<4x256xf32> to vector<4x16xf32>
    %c0_86 = arith.constant 0 : index
    %c253_87 = arith.constant 253 : index
    %108 = vector.load %arg5[%c0_86, %c253_87] : memref<8x512xf32, #tpu.memory_space<vmem>>, vector<4x16xf32>
    tpu.vector_store %arg5[%c0_86, %c253_87], %107 {strides = array<i32>} : memref<8x512xf32, #tpu.memory_space<vmem>>, vector<4x16xf32>,
    %109 = vector.extract_strided_slice %80 {offsets = [0, 224], sizes = [4, 16], strides = [1, 1]} : vector<4x256xf32> to vector<4x16xf32>
    %c0_88 = arith.constant 0 : index
    %c271_89 = arith.constant 271 : index
    %110 = vector.load %arg5[%c0_88, %c271_89] : memref<8x512xf32, #tpu.memory_space<vmem>>, vector<4x16xf32>
    tpu.vector_store %arg5[%c0_88, %c271_89], %109 {strides = array<i32>} : memref<8x512xf32, #tpu.memory_space<vmem>>, vector<4x16xf32>,
    %111 = vector.extract_strided_slice %80 {offsets = [0, 240], sizes = [4, 16], strides = [1, 1]} : vector<4x256xf32> to vector<4x16xf32>
    %c0_90 = arith.constant 0 : index
    %c289_91 = arith.constant 289 : index
    %112 = vector.load %arg5[%c0_90, %c289_91] : memref<8x512xf32, #tpu.memory_space<vmem>>, vector<4x16xf32>
    tpu.vector_store %arg5[%c0_90, %c289_91], %111 {strides = array<i32>} : memref<8x512xf32, #tpu.memory_space<vmem>>, vector<4x16xf32>,
    %c0_92 = arith.constant 0 : index
    %c0_93 = arith.constant 0 : index
    %113 = vector.load %arg5[%c0_92, %c0_93] : memref<8x512xf32, #tpu.memory_space<vmem>>, vector<8x384xf32>
    %c0_94 = arith.constant 0 : index
    %c0_95 = arith.constant 0 : index
    %114 = vector.load %arg6[%c0_94, %c0_95] : memref<72x384xf32, #tpu.memory_space<vmem>>, vector<8x384xf32>
    tpu.vector_store %arg6[%c0_94, %c0_95], %113 {strides = array<i32>} : memref<72x384xf32, #tpu.memory_space<vmem>>, vector<8x384xf32>,
    %c0_96 = arith.constant 0 : index
    %c0_97 = arith.constant 0 : index
    %115 = vector.load %arg5[%c0_96, %c0_97] : memref<8x512xf32, #tpu.memory_space<vmem>>, vector<8x512xf32>
    %c511_i32_98 = arith.constant 511 : i32
    %116 = tpu.dynamic_rotate %115 by %c511_i32_98 dim 1 : vector<8x512xf32>, i32 -> vector<8x512xf32>
    %117 = vector.extract_strided_slice %116 {offsets = [0, 0], sizes = [8, 384], strides = [1, 1]} : vector<8x512xf32> to vector<8x384xf32>
    %c8_99 = arith.constant 8 : index
    %c0_100 = arith.constant 0 : index
    %118 = vector.load %arg6[%c8_99, %c0_100] : memref<72x384xf32, #tpu.memory_space<vmem>>, vector<8x384xf32>
    tpu.vector_store %arg6[%c8_99, %c0_100], %117 {strides = array<i32>} : memref<72x384xf32, #tpu.memory_space<vmem>>, vector<8x384xf32>,
    %c0_101 = arith.constant 0 : index
    %c0_102 = arith.constant 0 : index
    %119 = vector.load %arg5[%c0_101, %c0_102] : memref<8x512xf32, #tpu.memory_space<vmem>>, vector<8x512xf32>
    %c510_i32_103 = arith.constant 510 : i32
    %120 = tpu.dynamic_rotate %119 by %c510_i32_103 dim 1 : vector<8x512xf32>, i32 -> vector<8x512xf32>
    %121 = vector.extract_strided_slice %120 {offsets = [0, 0], sizes = [8, 384], strides = [1, 1]} : vector<8x512xf32> to vector<8x384xf32>
    %c16_104 = arith.constant 16 : index
    %c0_105 = arith.constant 0 : index
    %122 = vector.load %arg6[%c16_104, %c0_105] : memref<72x384xf32, #tpu.memory_space<vmem>>, vector<8x384xf32>
    tpu.vector_store %arg6[%c16_104, %c0_105], %121 {strides = array<i32>} : memref<72x384xf32, #tpu.memory_space<vmem>>, vector<8x384xf32>,
    %c0_106 = arith.constant 0 : index
    %c0_107 = arith.constant 0 : index
    %123 = vector.load %arg5[%c0_106, %c0_107] : memref<8x512xf32, #tpu.memory_space<vmem>>, vector<8x512xf32>
    %c494_i32_108 = arith.constant 494 : i32
    %124 = tpu.dynamic_rotate %123 by %c494_i32_108 dim 1 : vector<8x512xf32>, i32 -> vector<8x512xf32>
    %125 = vector.extract_strided_slice %124 {offsets = [0, 0], sizes = [8, 384], strides = [1, 1]} : vector<8x512xf32> to vector<8x384xf32>
    %c24_109 = arith.constant 24 : index
    %c0_110 = arith.constant 0 : index
    %126 = vector.load %arg6[%c24_109, %c0_110] : memref<72x384xf32, #tpu.memory_space<vmem>>, vector<8x384xf32>
    tpu.vector_store %arg6[%c24_109, %c0_110], %125 {strides = array<i32>} : memref<72x384xf32, #tpu.memory_space<vmem>>, vector<8x384xf32>,
    %c0_111 = arith.constant 0 : index
    %c0_112 = arith.constant 0 : index
    %127 = vector.load %arg5[%c0_111, %c0_112] : memref<8x512xf32, #tpu.memory_space<vmem>>, vector<8x512xf32>
    %c493_i32_113 = arith.constant 493 : i32
    %128 = tpu.dynamic_rotate %127 by %c493_i32_113 dim 1 : vector<8x512xf32>, i32 -> vector<8x512xf32>
    %129 = vector.extract_strided_slice %128 {offsets = [0, 0], sizes = [8, 384], strides = [1, 1]} : vector<8x512xf32> to vector<8x384xf32>
    %c32_114 = arith.constant 32 : index
    %c0_115 = arith.constant 0 : index
    %130 = vector.load %arg6[%c32_114, %c0_115] : memref<72x384xf32, #tpu.memory_space<vmem>>, vector<8x384xf32>
    tpu.vector_store %arg6[%c32_114, %c0_115], %129 {strides = array<i32>} : memref<72x384xf32, #tpu.memory_space<vmem>>, vector<8x384xf32>,
    %c0_116 = arith.constant 0 : index
    %c0_117 = arith.constant 0 : index
    %131 = vector.load %arg5[%c0_116, %c0_117] : memref<8x512xf32, #tpu.memory_space<vmem>>, vector<8x512xf32>
    %c492_i32_118 = arith.constant 492 : i32
    %132 = tpu.dynamic_rotate %131 by %c492_i32_118 dim 1 : vector<8x512xf32>, i32 -> vector<8x512xf32>
    %133 = vector.extract_strided_slice %132 {offsets = [0, 0], sizes = [8, 384], strides = [1, 1]} : vector<8x512xf32> to vector<8x384xf32>
    %c40_119 = arith.constant 40 : index
    %c0_120 = arith.constant 0 : index
    %134 = vector.load %arg6[%c40_119, %c0_120] : memref<72x384xf32, #tpu.memory_space<vmem>>, vector<8x384xf32>
    tpu.vector_store %arg6[%c40_119, %c0_120], %133 {strides = array<i32>} : memref<72x384xf32, #tpu.memory_space<vmem>>, vector<8x384xf32>,
    %c0_121 = arith.constant 0 : index
    %c0_122 = arith.constant 0 : index
    %135 = vector.load %arg5[%c0_121, %c0_122] : memref<8x512xf32, #tpu.memory_space<vmem>>, vector<8x512xf32>
    %c476_i32_123 = arith.constant 476 : i32
    %136 = tpu.dynamic_rotate %135 by %c476_i32_123 dim 1 : vector<8x512xf32>, i32 -> vector<8x512xf32>
    %137 = vector.extract_strided_slice %136 {offsets = [0, 0], sizes = [8, 384], strides = [1, 1]} : vector<8x512xf32> to vector<8x384xf32>
    %c48_124 = arith.constant 48 : index
    %c0_125 = arith.constant 0 : index
    %138 = vector.load %arg6[%c48_124, %c0_125] : memref<72x384xf32, #tpu.memory_space<vmem>>, vector<8x384xf32>
    tpu.vector_store %arg6[%c48_124, %c0_125], %137 {strides = array<i32>} : memref<72x384xf32, #tpu.memory_space<vmem>>, vector<8x384xf32>,
    %c0_126 = arith.constant 0 : index
    %c0_127 = arith.constant 0 : index
    %139 = vector.load %arg5[%c0_126, %c0_127] : memref<8x512xf32, #tpu.memory_space<vmem>>, vector<8x512xf32>
    %c475_i32_128 = arith.constant 475 : i32
    %140 = tpu.dynamic_rotate %139 by %c475_i32_128 dim 1 : vector<8x512xf32>, i32 -> vector<8x512xf32>
    %141 = vector.extract_strided_slice %140 {offsets = [0, 0], sizes = [8, 384], strides = [1, 1]} : vector<8x512xf32> to vector<8x384xf32>
    %c56_129 = arith.constant 56 : index
    %c0_130 = arith.constant 0 : index
    %142 = vector.load %arg6[%c56_129, %c0_130] : memref<72x384xf32, #tpu.memory_space<vmem>>, vector<8x384xf32>
    tpu.vector_store %arg6[%c56_129, %c0_130], %141 {strides = array<i32>} : memref<72x384xf32, #tpu.memory_space<vmem>>, vector<8x384xf32>,
    %c0_131 = arith.constant 0 : index
    %c0_132 = arith.constant 0 : index
    %143 = vector.load %arg5[%c0_131, %c0_132] : memref<8x512xf32, #tpu.memory_space<vmem>>, vector<8x512xf32>
    %c474_i32_133 = arith.constant 474 : i32
    %144 = tpu.dynamic_rotate %143 by %c474_i32_133 dim 1 : vector<8x512xf32>, i32 -> vector<8x512xf32>
    %145 = vector.extract_strided_slice %144 {offsets = [0, 0], sizes = [8, 384], strides = [1, 1]} : vector<8x512xf32> to vector<8x384xf32>
    %c64_134 = arith.constant 64 : index
    %c0_135 = arith.constant 0 : index
    %146 = vector.load %arg6[%c64_134, %c0_135] : memref<72x384xf32, #tpu.memory_space<vmem>>, vector<8x384xf32>
    tpu.vector_store %arg6[%c64_134, %c0_135], %145 {strides = array<i32>} : memref<72x384xf32, #tpu.memory_space<vmem>>, vector<8x384xf32>,
    %c0_136 = arith.constant 0 : index
    %c0_137 = arith.constant 0 : index
    %147 = vector.load %arg2[%c0_136, %c0_137] : memref<8x72xf32, #tpu.memory_space<vmem>>, vector<8x72xf32>
    %c0_138 = arith.constant 0 : index
    %c0_139 = arith.constant 0 : index
    %148 = vector.load %arg6[%c0_138, %c0_139] : memref<72x384xf32, #tpu.memory_space<vmem>>, vector<72x384xf32>
    %cst_140 = arith.constant dense<0.000000e+00> : vector<8x384xf32>
    %149 = tpu.matmul %147, %148, %cst_140 {dimension_numbers = #tpu.dot_dimension_numbers<[1], [0], [0], [1], [0, 0, 1, 1], [], []>} : vector<8x72xf32>, vector<72x384xf32>, vector<8x384xf32> -> vector<8x384xf32>
    %c0_141 = arith.constant 0 : index
    %c0_142 = arith.constant 0 : index
    %150 = vector.load %arg3[%c0_141, %c0_142] : memref<8x1xf32, #tpu.memory_space<vmem>>, vector<8x1xf32>
    %151 = vector.broadcast %150 : vector<8x1xf32> to vector<8x384xf32>
    %152 = arith.addf %149, %151 : vector<8x384xf32>
    %c1_143 = arith.constant 1 : index
    %c0_144 = arith.constant 0 : index
    %c0_145 = arith.constant 0 : index
    %153 = vector.load %arg4[%c1_143, %c0_144, %c0_145] : memref<2x8x384xf32, #tpu.memory_space<vmem>>, vector<1x8x384xf32>
    %154 = vector.shape_cast %153 : vector<1x8x384xf32> to vector<8x384xf32>
    %155 = vector.shape_cast %152 : vector<8x384xf32> to vector<1x8x384xf32>
    tpu.vector_store %arg4[%c1_143, %c0_144, %c0_145], %155 {strides = array<i32>} : memref<2x8x384xf32, #tpu.memory_space<vmem>>, vector<1x8x384xf32>,
    return
  }
  func.func @transform_0(%arg0: i32) -> (i32, i32, i32) {
    %c0_i32 = arith.constant 0 : i32
    %c0_i32_0 = arith.constant 0 : i32
    %c0_i32_1 = arith.constant 0 : i32
    return %arg0, %c0_i32, %c0_i32_0 : i32, i32, i32
  }
  func.func @transform_1(%arg0: i32) -> (i32, i32) {
    %c0_i32 = arith.constant 0 : i32
    %c0_i32_0 = arith.constant 0 : i32
    %c0_i32_1 = arith.constant 0 : i32
    return %c0_i32, %c0_i32_0 : i32, i32
  }
  func.func @transform_2(%arg0: i32) -> (i32, i32) {
    %c0_i32 = arith.constant 0 : i32
    %c0_i32_0 = arith.constant 0 : i32
    %c0_i32_1 = arith.constant 0 : i32
    return %c0_i32, %c0_i32_0 : i32, i32
  }
  func.func @transform_3(%arg0: i32) -> (i32, i32, i32) {
    %c0_i32 = arith.constant 0 : i32
    %c0_i32_0 = arith.constant 0 : i32
    %c0_i32_1 = arith.constant 0 : i32
    return %arg0, %c0_i32, %c0_i32_0 : i32, i32, i32
  }
}

</mosaic_0001>

<llo_original>
// kernel: conv2d_pallas.1
$region0: #{conv2d_pallas.1}
  #allocation0 [shape = 'u32[]', space=smem, size = 0x4, offset = 0x4, fixed_abs, tag = 'smem constant byte address 0x4 - core index']
  #allocation1 [shape = 'u32[144,128]{1,0:T(1,128)}', space=vmem, size = 0x12000, scoped, tag = 'internal scratch']
  #allocation2 [shape = 'f32[8,512]{1,0:T(8,128)}', space=vmem, size = 0x4000, scoped, tag = 'scratch operand']
  #allocation3 [shape = 'f32[72,384]{1,0:T(8,128)}', space=vmem, size = 0x1b000, scoped, tag = 'scratch operand']
  %s0 = inlined_call_operand.hbm [shape: f32[2,4,256], index: 0, kind: input, shape index: {}]
  %s1 = inlined_call_operand.hbm [shape: f32[8,72], index: 1, kind: input, shape index: {}]
  %s2 = inlined_call_operand.hbm [shape: f32[8,1], index: 2, kind: input, shape index: {}]
  %s3 = inlined_call_operand.hbm [shape: f32[2,8,384], index: 3, kind: output, shape index: {}]
  %s4 = sld [smem:[#allocation0]]
  $region34: #{conv2d_pallas.1} parent=0
    _
  %s6 = ssub.s32 1, %s4
  %s7 = scalar_select 0, %s6, %s4
  $region1: #{conv2d_pallas.1} parent=0
    #allocation4 [shape = 'u8[8192]{0}', space=vmem, size = 0x2000, scoped, tag = 'input window, operand 0, single buffered']
    #allocation5 [shape = 's32[1]{0}', space=sflag, size = 0x4, scoped, tag = 'scoped memory for conv2d_pallas.1']
    #allocation6 [shape = 's32[1]{0}', space=sflag, size = 0x4, scoped, tag = 'scoped memory for conv2d_pallas.1']
    #allocation7 [shape = 'u8[4096]{0}', space=vmem, size = 0x1000, scoped, tag = 'input window, operand 1, single buffered']
    #allocation8 [shape = 's32[1]{0}', space=sflag, size = 0x4, scoped, tag = 'scoped memory for conv2d_pallas.1']
    #allocation9 [shape = 'u8[4096]{0}', space=vmem, size = 0x1000, scoped, tag = 'input window, operand 2, single buffered']
    #allocation10 [shape = 'u8[24576]{0}', space=vmem, size = 0x6000, scoped, tag = 'output window, operand 0, single buffered']
    %8 = vsyncpa [#allocation5], 0
    %9 = vsyncpa [#allocation8], 0
    %10 = vsyncpa [#allocation6], 0
    // Predicated region
    $region2: #{conv2d_pallas.1} parent=1 // pred_check
      _
    $region3: #{conv2d_pallas.1} parent=1 // pred_check_branch
      %12 = sbr.rel (0) target = $region5
    $region4: #{conv2d_pallas.1} parent=1 // pred_region
      %s14 = ssub.s32 256, 256
      %15 = vsyncadd [#allocation5], %s14
      %s16 = sshll.u32 [#allocation4], 4
      %s17 = int_to_ptr.vmem [resolvable:$true] %s16
      %22 = dma.hbm_to_vmem [thread:$0]  %s0, 256, %s17, [#allocation5], 128, 128, 8
    $region5: #{conv2d_pallas.1} parent=1 // pred_fallthru
      _
    // Predicated region
    $region6: #{conv2d_pallas.1} parent=1 // pred_check
      _
    $region7: #{conv2d_pallas.1} parent=1 // pred_check_branch
      %24 = sbr.rel (0) target = $region9
    $region8: #{conv2d_pallas.1} parent=1 // pred_region
      %s26 = ssub.s32 128, 128
      %27 = vsyncadd [#allocation8], %s26
      %s29 = sshll.u32 [#allocation7], 4
      %s30 = int_to_ptr.vmem [resolvable:$true] %s29
      %32 = dma.hbm_to_vmem [thread:$0]  %s1, 128, %s30, [#allocation8]
    $region9: #{conv2d_pallas.1} parent=1 // pred_fallthru
      _
    // Predicated region
    $region10: #{conv2d_pallas.1} parent=1 // pred_check
      _
    $region11: #{conv2d_pallas.1} parent=1 // pred_check_branch
      %34 = sbr.rel (0) target = $region13
    $region12: #{conv2d_pallas.1} parent=1 // pred_region
      %s36 = ssub.s32 128, 128
      %37 = vsyncadd [#allocation8], %s36
      %s39 = sshll.u32 [#allocation9], 4
      %s40 = int_to_ptr.vmem [resolvable:$true] %s39
      %42 = dma.hbm_to_vmem [thread:$0]  %s2, 128, %s40, [#allocation8]
    $region13: #{conv2d_pallas.1} parent=1 // pred_fallthru
      _
    // Predicated region
    $region14: #{conv2d_pallas.1} parent=1 // pred_check
      _
    $region15: #{conv2d_pallas.1} parent=1 // pred_check_branch
      %44 = sbr.rel (0) target = $region17
    $region16: #{conv2d_pallas.1} parent=1 // pred_region
      %45 = dma.done [#allocation5], 256
    $region17: #{conv2d_pallas.1} parent=1 // pred_fallthru
      _
    // Predicated region
    $region18: #{conv2d_pallas.1} parent=1 // pred_check
      _
    $region19: #{conv2d_pallas.1} parent=1 // pred_check_branch
      %47 = sbr.rel (0) target = $region21
    $region20: #{conv2d_pallas.1} parent=1 // pred_region
      %48 = dma.done [#allocation8], 128
    $region21: #{conv2d_pallas.1} parent=1 // pred_fallthru
      _
    // Predicated region
    $region22: #{conv2d_pallas.1} parent=1 // pred_check
      _
    $region23: #{conv2d_pallas.1} parent=1 // pred_check_branch
      %50 = sbr.rel (0) target = $region25
    $region24: #{conv2d_pallas.1} parent=1 // pred_region
      %51 = dma.done [#allocation8], 128
    $region25: #{conv2d_pallas.1} parent=1 // pred_fallthru
      _
    %52 = vst [vmem:[#allocation2] sm:$0xff] 0.0
    %53 = vst [vmem:[#allocation2 + $0x8] sm:$0xff] 0.0
    %54 = vst [vmem:[#allocation2 + $0x10] sm:$0xff] 0.0
    %55 = vst [vmem:[#allocation2 + $0x18] sm:$0xff] 0.0
    %v56 = vld [vmem:[#allocation4] sm:$0xff]
    %58 = vrot.lane.b32.xlu0 %v56, 19
    %v59 = vpop.permute.xlu0 %58
    %vm61 = vcmask 281752
    %62 = vst.msk [vmem:[#allocation2] sm:$0xf] %vm61, %v59
    %63 = vrot.lane.b32.xlu0 %v56, 21
    %v64 = vpop.permute.xlu0 %63
    %vm66 = vcmask 429352
    %67 = vst.msk [vmem:[#allocation2] sm:$0xf] %vm66, %v64
    %68 = vrot.lane.b32.xlu0 %v56, 23
    %v69 = vpop.permute.xlu0 %68
    %vm71 = vcmask 576952
    %72 = vst.msk [vmem:[#allocation2] sm:$0xf] %vm71, %v69
    %73 = vrot.lane.b32.xlu0 %v56, 25
    %v74 = vpop.permute.xlu0 %73
    %vm76 = vcmask 724552
    %77 = vst.msk [vmem:[#allocation2] sm:$0xf] %vm76, %v74
    %78 = vrot.lane.b32.xlu0 %v56, 27
    %v79 = vpop.permute.xlu0 %78
    %vm81 = vcmask 872152
    %82 = vst.msk [vmem:[#allocation2] sm:$0xf] %vm81, %v79
    %83 = vrot.lane.b32.xlu0 %v56, 29
    %v84 = vpop.permute.xlu0 %83
    %vm86 = vcmask 1019752
    %87 = vst.msk [vmem:[#allocation2] sm:$0xf] %vm86, %v84
    %88 = vrot.lane.b32.xlu0 %v56, 31
    %v89 = vpop.permute.xlu0 %88
    %vm91 = vcmask 1044472
    %92 = vst.msk [vmem:[#allocation2] sm:$0xf] %vm91, %v89
    %vm93 = vcmask 117760
    %94 = vst.msk [vmem:[#allocation2 + $0x8] sm:$0xf] %vm93, %v89
    %95 = vrot.lane.b32.xlu0 %v56, 33
    %v96 = vpop.permute.xlu0 %95
    %vm98 = vcmask 265352
    %99 = vst.msk [vmem:[#allocation2 + $0x8] sm:$0xf] %vm98, %v96
    %v100 = vcombine.high %v56, %v56
    %101 = vrot.lane.b32.xlu0 %v100, 35
    %v102 = vpop.permute.xlu0 %101
    %vm104 = vcmask 412952
    %105 = vst.msk [vmem:[#allocation2 + $0x8] sm:$0xf] %vm104, %v102
    %106 = vrot.lane.b32.xlu0 %v100, 37
    %v107 = vpop.permute.xlu0 %106
    %vm109 = vcmask 560552
    %110 = vst.msk [vmem:[#allocation2 + $0x8] sm:$0xf] %vm109, %v107
    %111 = vrot.lane.b32.xlu0 %v100, 39
    %v112 = vpop.permute.xlu0 %111
    %vm114 = vcmask 708152
    %115 = vst.msk [vmem:[#allocation2 + $0x8] sm:$0xf] %vm114, %v112
    %116 = vrot.lane.b32.xlu0 %v100, 41
    %v117 = vpop.permute.xlu0 %116
    %vm119 = vcmask 855752
    %120 = vst.msk [vmem:[#allocation2 + $0x8] sm:$0xf] %vm119, %v117
    %121 = vrot.lane.b32.xlu0 %v100, 43
    %v122 = vpop.permute.xlu0 %121
    %vm124 = vcmask 1003352
    %125 = vst.msk [vmem:[#allocation2 + $0x8] sm:$0xf] %vm124, %v122
    %126 = vrot.lane.b32.xlu0 %v100, 45
    %v127 = vpop.permute.xlu0 %126
    %vm129 = vcmask 1044456
    %130 = vst.msk [vmem:[#allocation2 + $0x8] sm:$0xf] %vm129, %v127
    %vm131 = vcmask 101376
    %132 = vst.msk [vmem:[#allocation2 + $0x10] sm:$0xf] %vm131, %v127
    %133 = vrot.lane.b32.xlu0 %v100, 47
    %v134 = vpop.permute.xlu0 %133
    %vm136 = vcmask 248952
    %137 = vst.msk [vmem:[#allocation2 + $0x10] sm:$0xf] %vm136, %v134
    %138 = vrot.lane.b32.xlu0 %v100, 49
    %v139 = vpop.permute.xlu0 %138
    %vm141 = vcmask 396552
    %142 = vst.msk [vmem:[#allocation2 + $0x10] sm:$0xf] %vm141, %v139
    %v143 = vld [vmem:[#allocation2] sm:$0xff]
    %v144 = vld [vmem:[#allocation2 + $0x8] sm:$0xff]
    %v145 = vld [vmem:[#allocation2 + $0x10] sm:$0xff]
    %146 = vst [vmem:[#allocation3] sm:$0xff] %v143
    %147 = vst [vmem:[#allocation3 + $0x8] sm:$0xff] %v144
    %148 = vst [vmem:[#allocation3 + $0x10] sm:$0xff] %v145
    %v149 = vld [vmem:[#allocation2] sm:$0xff]
    %v150 = vld [vmem:[#allocation2 + $0x8] sm:$0xff]
    %v151 = vld [vmem:[#allocation2 + $0x10] sm:$0xff]
    %v152 = vld [vmem:[#allocation2 + $0x18] sm:$0xff]
    %153 = vrot.lane.b32.xlu0 %v149, 127
    %v154 = vpop.permute.xlu0 %153
    %155 = vrot.lane.b32.xlu0 %v150, 127
    %v156 = vpop.permute.xlu0 %155
    %157 = vrot.lane.b32.xlu0 %v151, 127
    %v158 = vpop.permute.xlu0 %157
    %159 = vrot.lane.b32.xlu0 %v152, 127
    %v160 = vpop.permute.xlu0 %159
    %v161 = vlaneseq
    %v162 = vand.u32 %v161, 127
    %vm163 = vcmp.lt.s32.totalorder %v162, 127
    %v164 = vsel %vm163, %v158, %v160
    %v165 = vsel %vm163, %v156, %v158
    %v166 = vsel %vm163, %v154, %v156
    %167 = vst [vmem:[#allocation3 + $0x18] sm:$0xff] %v166
    %168 = vst [vmem:[#allocation3 + $0x20] sm:$0xff] %v165
    %169 = vst [vmem:[#allocation3 + $0x28] sm:$0xff] %v164
    %v170 = vld [vmem:[#allocation2] sm:$0xff]
    %v171 = vld [vmem:[#allocation2 + $0x8] sm:$0xff]
    %v172 = vld [vmem:[#allocation2 + $0x10] sm:$0xff]
    %v173 = vld [vmem:[#allocation2 + $0x18] sm:$0xff]
    %174 = vrot.lane.b32.xlu0 %v170, 126
    %v175 = vpop.permute.xlu0 %174
    %176 = vrot.lane.b32.xlu0 %v171, 126
    %v177 = vpop.permute.xlu0 %176
    %178 = vrot.lane.b32.xlu0 %v172, 126
    %v179 = vpop.permute.xlu0 %178
    %180 = vrot.lane.b32.xlu0 %v173, 126
    %v181 = vpop.permute.xlu0 %180
    %vm182 = vcmp.lt.s32.totalorder %v162, 126
    %v183 = vsel %vm182, %v179, %v181
    %v184 = vsel %vm182, %v177, %v179
    %v185 = vsel %vm182, %v175, %v177
    %186 = vst [vmem:[#allocation3 + $0x30] sm:$0xff] %v185
    %187 = vst [vmem:[#allocation3 + $0x38] sm:$0xff] %v184
    %188 = vst [vmem:[#allocation3 + $0x40] sm:$0xff] %v183
    %v189 = vld [vmem:[#allocation2] sm:$0xff]
    %v190 = vld [vmem:[#allocation2 + $0x8] sm:$0xff]
    %v191 = vld [vmem:[#allocation2 + $0x10] sm:$0xff]
    %v192 = vld [vmem:[#allocation2 + $0x18] sm:$0xff]
    %193 = vrot.lane.b32.xlu0 %v189, 110
    %v194 = vpop.permute.xlu0 %193
    %195 = vrot.lane.b32.xlu0 %v190, 110
    %v196 = vpop.permute.xlu0 %195
    %197 = vrot.lane.b32.xlu0 %v191, 110
    %v198 = vpop.permute.xlu0 %197
    %199 = vrot.lane.b32.xlu0 %v192, 110
    %v200 = vpop.permute.xlu0 %199
    %vm201 = vcmp.lt.s32.totalorder %v162, 110
    %v202 = vsel %vm201, %v198, %v200
    %v203 = vsel %vm201, %v196, %v198
    %v204 = vsel %vm201, %v194, %v196
    %205 = vst [vmem:[#allocation3 + $0x48] sm:$0xff] %v204
    %206 = vst [vmem:[#allocation3 + $0x50] sm:$0xff] %v203
    %207 = vst [vmem:[#allocation3 + $0x58] sm:$0xff] %v202
    %v208 = vld [vmem:[#allocation2] sm:$0xff]
    %v209 = vld [vmem:[#allocation2 + $0x8] sm:$0xff]
    %v210 = vld [vmem:[#allocation2 + $0x10] sm:$0xff]
    %v211 = vld [vmem:[#allocation2 + $0x18] sm:$0xff]
    %212 = vrot.lane.b32.xlu0 %v208, 109
    %v213 = vpop.permute.xlu0 %212
    %214 = vrot.lane.b32.xlu0 %v209, 109
    %v215 = vpop.permute.xlu0 %214
    %216 = vrot.lane.b32.xlu0 %v210, 109
    %v217 = vpop.permute.xlu0 %216
    %218 = vrot.lane.b32.xlu0 %v211, 109
    %v219 = vpop.permute.xlu0 %218
    %vm220 = vcmp.lt.s32.totalorder %v162, 109
    %v221 = vsel %vm220, %v217, %v219
    %v222 = vsel %vm220, %v215, %v217
    %v223 = vsel %vm220, %v213, %v215
    %224 = vst [vmem:[#allocation3 + $0x60] sm:$0xff] %v223
    %225 = vst [vmem:[#allocation3 + $0x68] sm:$0xff] %v222
    %226 = vst [vmem:[#allocation3 + $0x70] sm:$0xff] %v221
    %v227 = vld [vmem:[#allocation2] sm:$0xff]
    %v228 = vld [vmem:[#allocation2 + $0x8] sm:$0xff]
    %v229 = vld [vmem:[#allocation2 + $0x10] sm:$0xff]
    %v230 = vld [vmem:[#allocation2 + $0x18] sm:$0xff]
    %231 = vrot.lane.b32.xlu0 %v227, 108
    %v232 = vpop.permute.xlu0 %231
    %233 = vrot.lane.b32.xlu0 %v228, 108
    %v234 = vpop.permute.xlu0 %233
    %235 = vrot.lane.b32.xlu0 %v229, 108
    %v236 = vpop.permute.xlu0 %235
    %237 = vrot.lane.b32.xlu0 %v230, 108
    %v238 = vpop.permute.xlu0 %237
    %vm239 = vcmp.lt.s32.totalorder %v162, 108
    %v240 = vsel %vm239, %v236, %v238
    %v241 = vsel %vm239, %v234, %v236
    %v242 = vsel %vm239, %v232, %v234
    %243 = vst [vmem:[#allocation3 + $0x78] sm:$0xff] %v242
    %244 = vst [vmem:[#allocation3 + $0x80] sm:$0xff] %v241
    %245 = vst [vmem:[#allocation3 + $0x88] sm:$0xff] %v240
    %v246 = vld [vmem:[#allocation2] sm:$0xff]
    %v247 = vld [vmem:[#allocation2 + $0x8] sm:$0xff]
    %v248 = vld [vmem:[#allocation2 + $0x10] sm:$0xff]
    %v249 = vld [vmem:[#allocation2 + $0x18] sm:$0xff]
    %250 = vrot.lane.b32.xlu0 %v246, 92
    %v251 = vpop.permute.xlu0 %250
    %252 = vrot.lane.b32.xlu0 %v247, 92
    %v253 = vpop.permute.xlu0 %252
    %254 = vrot.lane.b32.xlu0 %v248, 92
    %v255 = vpop.permute.xlu0 %254
    %256 = vrot.lane.b32.xlu0 %v249, 92
    %v257 = vpop.permute.xlu0 %256
    %vm258 = vcmp.lt.s32.totalorder %v162, 92
    %v259 = vsel %vm258, %v255, %v257
    %v260 = vsel %vm258, %v253, %v255
    %v261 = vsel %vm258, %v251, %v253
    %262 = vst [vmem:[#allocation3 + $0x90] sm:$0xff] %v261
    %263 = vst [vmem:[#allocation3 + $0x98] sm:$0xff] %v260
    %264 = vst [vmem:[#allocation3 + $0xa0] sm:$0xff] %v259
    %v265 = vld [vmem:[#allocation2] sm:$0xff]
    %v266 = vld [vmem:[#allocation2 + $0x8] sm:$0xff]
    %v267 = vld [vmem:[#allocation2 + $0x10] sm:$0xff]
    %v268 = vld [vmem:[#allocation2 + $0x18] sm:$0xff]
    %269 = vrot.lane.b32.xlu0 %v265, 91
    %v270 = vpop.permute.xlu0 %269
    %271 = vrot.lane.b32.xlu0 %v266, 91
    %v272 = vpop.permute.xlu0 %271
    %273 = vrot.lane.b32.xlu0 %v267, 91
    %v274 = vpop.permute.xlu0 %273
    %275 = vrot.lane.b32.xlu0 %v268, 91
    %v276 = vpop.permute.xlu0 %275
    %vm277 = vcmp.lt.s32.totalorder %v162, 91
    %v278 = vsel %vm277, %v274, %v276
    %v279 = vsel %vm277, %v272, %v274
    %v280 = vsel %vm277, %v270, %v272
    %281 = vst [vmem:[#allocation3 + $0xa8] sm:$0xff] %v280
    %282 = vst [vmem:[#allocation3 + $0xb0] sm:$0xff] %v279
    %283 = vst [vmem:[#allocation3 + $0xb8] sm:$0xff] %v278
    %v284 = vld [vmem:[#allocation2] sm:$0xff]
    %v285 = vld [vmem:[#allocation2 + $0x8] sm:$0xff]
    %v286 = vld [vmem:[#allocation2 + $0x10] sm:$0xff]
    %v287 = vld [vmem:[#allocation2 + $0x18] sm:$0xff]
    %288 = vrot.lane.b32.xlu0 %v284, 90
    %v289 = vpop.permute.xlu0 %288
    %290 = vrot.lane.b32.xlu0 %v285, 90
    %v291 = vpop.permute.xlu0 %290
    %292 = vrot.lane.b32.xlu0 %v286, 90
    %v293 = vpop.permute.xlu0 %292
    %294 = vrot.lane.b32.xlu0 %v287, 90
    %v295 = vpop.permute.xlu0 %294
    %vm296 = vcmp.lt.s32.totalorder %v162, 90
    %v297 = vsel %vm296, %v293, %v295
    %v298 = vsel %vm296, %v291, %v293
    %v299 = vsel %vm296, %v289, %v291
    %300 = vst [vmem:[#allocation3 + $0xc0] sm:$0xff] %v299
    %301 = vst [vmem:[#allocation3 + $0xc8] sm:$0xff] %v298
    %302 = vst [vmem:[#allocation3 + $0xd0] sm:$0xff] %v297
    %v303 = vld [vmem:[#allocation7] sm:$0xff]
    %v304 = vld [vmem:[#allocation3] sm:$0xff]
    %v305 = vld [vmem:[#allocation3 + $0x8] sm:$0xff]
    %v306 = vld [vmem:[#allocation3 + $0x10] sm:$0xff]
    %v307 = vld [vmem:[#allocation3 + $0x18] sm:$0xff]
    %v308 = vld [vmem:[#allocation3 + $0x20] sm:$0xff]
    %v309 = vld [vmem:[#allocation3 + $0x28] sm:$0xff]
    %v310 = vld [vmem:[#allocation3 + $0x30] sm:$0xff]
    %v311 = vld [vmem:[#allocation3 + $0x38] sm:$0xff]
    %v312 = vld [vmem:[#allocation3 + $0x40] sm:$0xff]
    %v313 = vld [vmem:[#allocation3 + $0x48] sm:$0xff]
    %v314 = vld [vmem:[#allocation3 + $0x50] sm:$0xff]
    %v315 = vld [vmem:[#allocation3 + $0x58] sm:$0xff]
    %v316 = vld [vmem:[#allocation3 + $0x60] sm:$0xff]
    %v317 = vld [vmem:[#allocation3 + $0x68] sm:$0xff]
    %v318 = vld [vmem:[#allocation3 + $0x70] sm:$0xff]
    %v319 = vld [vmem:[#allocation3 + $0x78] sm:$0xff]
    %v320 = vld [vmem:[#allocation3 + $0x80] sm:$0xff]
    %v321 = vld [vmem:[#allocation3 + $0x88] sm:$0xff]
    %v322 = vld [vmem:[#allocation3 + $0x90] sm:$0xff]
    %v323 = vld [vmem:[#allocation3 + $0x98] sm:$0xff]
    %v324 = vld [vmem:[#allocation3 + $0xa0] sm:$0xff]
    %v325 = vld [vmem:[#allocation3 + $0xa8] sm:$0xff]
    %v326 = vld [vmem:[#allocation3 + $0xb0] sm:$0xff]
    %v327 = vld [vmem:[#allocation3 + $0xb8] sm:$0xff]
    %v328 = vld [vmem:[#allocation3 + $0xc0] sm:$0xff]
    %v329 = vld [vmem:[#allocation3 + $0xc8] sm:$0xff]
    %v330 = vld [vmem:[#allocation3 + $0xd0] sm:$0xff]
    %v331 = vld [vmem:[#allocation9] sm:$0xff]
    %333 = vset.pattern.permute.xlu0 0
    %334 = vperm.xlu0 %333, %v331
    %v335 = vpop.permute.xlu0 %334
    %vm337 = vcmask 588800
    %v339 = vsel %vm337, %v303, 0
    %341 = vmatprep.subr.mxu0 %v305
    %342 = vmatpush1.msra.mxu0 %v304
    %343 = vmatprep.subr.mxu0 %v308
    %344 = vmatpush1.msra.mxu0 %v307
    %345 = vmatprep.subr.mxu0 %v311
    %346 = vmatpush1.msra.mxu0 %v310
    %347 = vmatprep.subr.mxu0 %v314
    %348 = vmatpush1.msra.mxu0 %v313
    %349 = vmatprep.subr.mxu0 %v317
    %350 = vmatpush1.msra.mxu0 %v316
    %351 = vmatprep.subr.mxu0 %v320
    %352 = vmatpush1.msra.mxu0 %v319
    %353 = vmatprep.subr.mxu0 %v323
    %354 = vmatpush1.msra.mxu0 %v322
    %355 = vmatprep.subr.mxu0 %v326
    %356 = vmatpush1.msra.mxu0 %v325
    %357 = vmatprep.subr.mxu0 %v329
    %358 = vmatpush1.msra.mxu0 %v328
    %359 = vmatprep.subr.mxu0 0.0
    %360 = vmatpush1.msra.mxu0 0.0
    %361 = vmatprep.subr.mxu0 0.0
    %362 = vmatpush1.msra.mxu0 0.0
    %363 = vmatprep.subr.mxu0 0.0
    %364 = vmatpush1.msra.mxu0 0.0
    %365 = vmatprep.subr.mxu0 0.0
    %366 = vmatpush1.msra.mxu0 0.0
    %367 = vmatprep.subr.mxu0 0.0
    %368 = vmatpush1.msra.mxu0 0.0
    %369 = vmatprep.subr.mxu0 0.0
    %370 = vmatpush1.msra.mxu0 0.0
    %371 = vmatprep.subr.mxu0 0.0
    %372 = vmatpush1.msra.mxu0 0.0
    %373 = vmatprep.subr.mxu0 0.0
    %374 = vmatpush1.msra.mxu0 0.0
    %375 = vmatprep.subr.mxu0 0.0
    %376 = vmatpush1.msra.mxu0 0.0
    %377 = vmatprep.subr.mxu0 0.0
    %378 = vmatpush1.msra.mxu0 0.0
    %379 = vmatprep.subr.mxu0 0.0
    %380 = vmatpush1.msra.mxu0 0.0
    %381 = vmatprep.subr.mxu0 0.0
    %382 = vmatpush1.msra.mxu0 0.0
    %383 = vmatprep.subr.mxu0 0.0
    %384 = vmatpush1.msra.mxu0 0.0
    %385 = vmatprep.subr.mxu0 0.0
    %386 = vmatpush1.msra.mxu0 0.0
    %387 = vmatprep.subr.mxu0 0.0
    %388 = vmatpush1.msra.mxu0 0.0
    %389 = vmatprep.subr.mxu0 0.0
    %390 = vmatpush1.msra.mxu0 0.0
    %391 = vmatprep.subr.mxu0 0.0
    %392 = vmatpush1.msra.mxu0 0.0
    %393 = vmatprep.subr.mxu0 0.0
    %394 = vmatpush1.msra.mxu0 0.0
    %395 = vmatprep.subr.mxu0 0.0
    %396 = vmatpush1.msra.mxu0 0.0
    %397 = vmatprep.subr.mxu0 0.0
    %398 = vmatpush1.msra.mxu0 0.0
    %399 = vmatprep.subr.mxu0 0.0
    %400 = vmatpush1.msra.mxu0 0.0
    %401 = vmatprep.subr.mxu0 0.0
    %402 = vmatpush1.msra.mxu0 0.0
    %403 = vmatprep.subr.mxu0 0.0
    %404 = vmatpush1.msra.mxu0 0.0
    %405 = vmatprep.mubr.f32.mxu0 0.0
    %406 = vmatmul.mubr.f32.gmra.mrb[0].mxu0 %v339
    %v407 = vpop.f32.mrb[0].mxu0
    %v408 = vadd.f32 %v335, %v407
    %v409 = vpop.f32.mrb[0].mxu0
    %v410 = vadd.f32 %v335, %v409
    %411 = vdwg.mxu0
    %412 = vmatprep.subr.mxu0 0.0
    %413 = vmatpush1.msra.mxu0 %v306
    %414 = vmatprep.subr.mxu0 0.0
    %415 = vmatpush1.msra.mxu0 %v309
    %416 = vmatprep.subr.mxu0 0.0
    %417 = vmatpush1.msra.mxu0 %v312
    %418 = vmatprep.subr.mxu0 0.0
    %419 = vmatpush1.msra.mxu0 %v315
    %420 = vmatprep.subr.mxu0 0.0
    %421 = vmatpush1.msra.mxu0 %v318
    %422 = vmatprep.subr.mxu0 0.0
    %423 = vmatpush1.msra.mxu0 %v321
    %424 = vmatprep.subr.mxu0 0.0
    %425 = vmatpush1.msra.mxu0 %v324
    %426 = vmatprep.subr.mxu0 0.0
    %427 = vmatpush1.msra.mxu0 %v327
    %428 = vmatprep.subr.mxu0 0.0
    %429 = vmatpush1.msra.mxu0 %v330
    %430 = vmatprep.subr.mxu0 0.0
    %431 = vmatpush1.msra.mxu0 0.0
    %432 = vmatprep.subr.mxu0 0.0
    %433 = vmatpush1.msra.mxu0 0.0
    %434 = vmatprep.subr.mxu0 0.0
    %435 = vmatpush1.msra.mxu0 0.0
    %436 = vmatprep.subr.mxu0 0.0
    %437 = vmatpush1.msra.mxu0 0.0
    %438 = vmatprep.subr.mxu0 0.0
    %439 = vmatpush1.msra.mxu0 0.0
    %440 = vmatprep.subr.mxu0 0.0
    %441 = vmatpush1.msra.mxu0 0.0
    %442 = vmatprep.subr.mxu0 0.0
    %443 = vmatpush1.msra.mxu0 0.0
    %444 = vmatprep.subr.mxu0 0.0
    %445 = vmatpush1.msra.mxu0 0.0
    %446 = vmatprep.subr.mxu0 0.0
    %447 = vmatpush1.msra.mxu0 0.0
    %448 = vmatprep.subr.mxu0 0.0
    %449 = vmatpush1.msra.mxu0 0.0
    %450 = vmatprep.subr.mxu0 0.0
    %451 = vmatpush1.msra.mxu0 0.0
    %452 = vmatprep.subr.mxu0 0.0
    %453 = vmatpush1.msra.mxu0 0.0
    %454 = vmatprep.subr.mxu0 0.0
    %455 = vmatpush1.msra.mxu0 0.0
    %456 = vmatprep.subr.mxu0 0.0
    %457 = vmatpush1.msra.mxu0 0.0
    %458 = vmatprep.subr.mxu0 0.0
    %459 = vmatpush1.msra.mxu0 0.0
    %460 = vmatprep.subr.mxu0 0.0
    %461 = vmatpush1.msra.mxu0 0.0
    %462 = vmatprep.subr.mxu0 0.0
    %463 = vmatpush1.msra.mxu0 0.0
    %464 = vmatprep.subr.mxu0 0.0
    %465 = vmatpush1.msra.mxu0 0.0
    %466 = vmatprep.subr.mxu0 0.0
    %467 = vmatpush1.msra.mxu0 0.0
    %468 = vmatprep.subr.mxu0 0.0
    %469 = vmatpush1.msra.mxu0 0.0
    %470 = vmatprep.subr.mxu0 0.0
    %471 = vmatpush1.msra.mxu0 0.0
    %472 = vmatprep.subr.mxu0 0.0
    %473 = vmatpush1.msra.mxu0 0.0
    %474 = vmatprep.subr.mxu0 0.0
    %475 = vmatpush1.msra.mxu0 0.0
    %476 = vmatprep.mubr.f32.mxu0 0.0
    %477 = vmatmul.mubr.f32.gmra.mrb[0].mxu0 %v339
    %v478 = vpop.f32.mrb[0].mxu0
    %v479 = vadd.f32 %v335, %v478
    %v480 = vpop.f32.mrb[0].mxu0
    %481 = vdwg.mxu0
    %482 = vst [vmem:[#allocation10] sm:$0xff] %v408
    %483 = vst [vmem:[#allocation10 + $0x8] sm:$0xff] %v410
    %484 = vst [vmem:[#allocation10 + $0x10] sm:$0xff] %v479
    %s485 = scalar_lea.vmem [#allocation4], 8
    %v486 = vld [vmem:[%s485] sm:$0xff]
    %488 = vrot.lane.b32.xlu0 %v486, 19
    %v489 = vpop.permute.xlu0 %488
    %491 = vst.msk [vmem:[#allocation2] sm:$0xf] %vm61, %v489
    %492 = vrot.lane.b32.xlu0 %v486, 21
    %v493 = vpop.permute.xlu0 %492
    %495 = vst.msk [vmem:[#allocation2] sm:$0xf] %vm66, %v493
    %496 = vrot.lane.b32.xlu0 %v486, 23
    %v497 = vpop.permute.xlu0 %496
    %499 = vst.msk [vmem:[#allocation2] sm:$0xf] %vm71, %v497
    %500 = vrot.lane.b32.xlu0 %v486, 25
    %v501 = vpop.permute.xlu0 %500
    %503 = vst.msk [vmem:[#allocation2] sm:$0xf] %vm76, %v501
    %504 = vrot.lane.b32.xlu0 %v486, 27
    %v505 = vpop.permute.xlu0 %504
    %507 = vst.msk [vmem:[#allocation2] sm:$0xf] %vm81, %v505
    %508 = vrot.lane.b32.xlu0 %v486, 29
    %v509 = vpop.permute.xlu0 %508
    %511 = vst.msk [vmem:[#allocation2] sm:$0xf] %vm86, %v509
    %512 = vrot.lane.b32.xlu0 %v486, 31
    %v513 = vpop.permute.xlu0 %512
    %515 = vst.msk [vmem:[#allocation2] sm:$0xf] %vm91, %v513
    %516 = vst.msk [vmem:[#allocation2 + $0x8] sm:$0xf] %vm93, %v513
    %517 = vrot.lane.b32.xlu0 %v486, 33
    %v518 = vpop.permute.xlu0 %517
    %520 = vst.msk [vmem:[#allocation2 + $0x8] sm:$0xf] %vm98, %v518
    %v521 = vcombine.high %v486, %v486
    %522 = vrot.lane.b32.xlu0 %v521, 35
    %v523 = vpop.permute.xlu0 %522
    %525 = vst.msk [vmem:[#allocation2 + $0x8] sm:$0xf] %vm104, %v523
    %526 = vrot.lane.b32.xlu0 %v521, 37
    %v527 = vpop.permute.xlu0 %526
    %529 = vst.msk [vmem:[#allocation2 + $0x8] sm:$0xf] %vm109, %v527
    %530 = vrot.lane.b32.xlu0 %v521, 39
    %v531 = vpop.permute.xlu0 %530
    %533 = vst.msk [vmem:[#allocation2 + $0x8] sm:$0xf] %vm114, %v531
    %534 = vrot.lane.b32.xlu0 %v521, 41
    %v535 = vpop.permute.xlu0 %534
    %537 = vst.msk [vmem:[#allocation2 + $0x8] sm:$0xf] %vm119, %v535
    %538 = vrot.lane.b32.xlu0 %v521, 43
    %v539 = vpop.permute.xlu0 %538
    %541 = vst.msk [vmem:[#allocation2 + $0x8] sm:$0xf] %vm124, %v539
    %542 = vrot.lane.b32.xlu0 %v521, 45
    %v543 = vpop.permute.xlu0 %542
    %545 = vst.msk [vmem:[#allocation2 + $0x8] sm:$0xf] %vm129, %v543
    %546 = vst.msk [vmem:[#allocation2 + $0x10] sm:$0xf] %vm131, %v543
    %547 = vrot.lane.b32.xlu0 %v521, 47
    %v548 = vpop.permute.xlu0 %547
    %550 = vst.msk [vmem:[#allocation2 + $0x10] sm:$0xf] %vm136, %v548
    %551 = vrot.lane.b32.xlu0 %v521, 49
    %v552 = vpop.permute.xlu0 %551
    %554 = vst.msk [vmem:[#allocation2 + $0x10] sm:$0xf] %vm141, %v552
    %v555 = vld [vmem:[#allocation2] sm:$0xff]
    %v556 = vld [vmem:[#allocation2 + $0x8] sm:$0xff]
    %v557 = vld [vmem:[#allocation2 + $0x10] sm:$0xff]
    %558 = vst [vmem:[#allocation3] sm:$0xff] %v555
    %559 = vst [vmem:[#allocation3 + $0x8] sm:$0xff] %v556
    %560 = vst [vmem:[#allocation3 + $0x10] sm:$0xff] %v557
    %v561 = vld [vmem:[#allocation2] sm:$0xff]
    %v562 = vld [vmem:[#allocation2 + $0x8] sm:$0xff]
    %v563 = vld [vmem:[#allocation2 + $0x10] sm:$0xff]
    %v564 = vld [vmem:[#allocation2 + $0x18] sm:$0xff]
    %565 = vrot.lane.b32.xlu0 %v561, 127
    %v566 = vpop.permute.xlu0 %565
    %567 = vrot.lane.b32.xlu0 %v562, 127
    %v568 = vpop.permute.xlu0 %567
    %569 = vrot.lane.b32.xlu0 %v563, 127
    %v570 = vpop.permute.xlu0 %569
    %571 = vrot.lane.b32.xlu0 %v564, 127
    %v572 = vpop.permute.xlu0 %571
    %v573 = vsel %vm163, %v570, %v572
    %v574 = vsel %vm163, %v568, %v570
    %v575 = vsel %vm163, %v566, %v568
    %576 = vst [vmem:[#allocation3 + $0x18] sm:$0xff] %v575
    %577 = vst [vmem:[#allocation3 + $0x20] sm:$0xff] %v574
    %578 = vst [vmem:[#allocation3 + $0x28] sm:$0xff] %v573
    %v579 = vld [vmem:[#allocation2] sm:$0xff]
    %v580 = vld [vmem:[#allocation2 + $0x8] sm:$0xff]
    %v581 = vld [vmem:[#allocation2 + $0x10] sm:$0xff]
    %v582 = vld [vmem:[#allocation2 + $0x18] sm:$0xff]
    %583 = vrot.lane.b32.xlu0 %v579, 126
    %v584 = vpop.permute.xlu0 %583
    %585 = vrot.lane.b32.xlu0 %v580, 126
    %v586 = vpop.permute.xlu0 %585
    %587 = vrot.lane.b32.xlu0 %v581, 126
    %v588 = vpop.permute.xlu0 %587
    %589 = vrot.lane.b32.xlu0 %v582, 126
    %v590 = vpop.permute.xlu0 %589
    %v591 = vsel %vm182, %v588, %v590
    %v592 = vsel %vm182, %v586, %v588
    %v593 = vsel %vm182, %v584, %v586
    %594 = vst [vmem:[#allocation3 + $0x30] sm:$0xff] %v593
    %595 = vst [vmem:[#allocation3 + $0x38] sm:$0xff] %v592
    %596 = vst [vmem:[#allocation3 + $0x40] sm:$0xff] %v591
    %v597 = vld [vmem:[#allocation2] sm:$0xff]
    %v598 = vld [vmem:[#allocation2 + $0x8] sm:$0xff]
    %v599 = vld [vmem:[#allocation2 + $0x10] sm:$0xff]
    %v600 = vld [vmem:[#allocation2 + $0x18] sm:$0xff]
    %601 = vrot.lane.b32.xlu0 %v597, 110
    %v602 = vpop.permute.xlu0 %601
    %603 = vrot.lane.b32.xlu0 %v598, 110
    %v604 = vpop.permute.xlu0 %603
    %605 = vrot.lane.b32.xlu0 %v599, 110
    %v606 = vpop.permute.xlu0 %605
    %607 = vrot.lane.b32.xlu0 %v600, 110
    %v608 = vpop.permute.xlu0 %607
    %v609 = vsel %vm201, %v606, %v608
    %v610 = vsel %vm201, %v604, %v606
    %v611 = vsel %vm201, %v602, %v604
    %612 = vst [vmem:[#allocation3 + $0x48] sm:$0xff] %v611
    %613 = vst [vmem:[#allocation3 + $0x50] sm:$0xff] %v610
    %614 = vst [vmem:[#allocation3 + $0x58] sm:$0xff] %v609
    %v615 = vld [vmem:[#allocation2] sm:$0xff]
    %v616 = vld [vmem:[#allocation2 + $0x8] sm:$0xff]
    %v617 = vld [vmem:[#allocation2 + $0x10] sm:$0xff]
    %v618 = vld [vmem:[#allocation2 + $0x18] sm:$0xff]
    %619 = vrot.lane.b32.xlu0 %v615, 109
    %v620 = vpop.permute.xlu0 %619
    %621 = vrot.lane.b32.xlu0 %v616, 109
    %v622 = vpop.permute.xlu0 %621
    %623 = vrot.lane.b32.xlu0 %v617, 109
    %v624 = vpop.permute.xlu0 %623
    %625 = vrot.lane.b32.xlu0 %v618, 109
    %v626 = vpop.permute.xlu0 %625
    %v627 = vsel %vm220, %v624, %v626
    %v628 = vsel %vm220, %v622, %v624
    %v629 = vsel %vm220, %v620, %v622
    %630 = vst [vmem:[#allocation3 + $0x60] sm:$0xff] %v629
    %631 = vst [vmem:[#allocation3 + $0x68] sm:$0xff] %v628
    %632 = vst [vmem:[#allocation3 + $0x70] sm:$0xff] %v627
    %v633 = vld [vmem:[#allocation2] sm:$0xff]
    %v634 = vld [vmem:[#allocation2 + $0x8] sm:$0xff]
    %v635 = vld [vmem:[#allocation2 + $0x10] sm:$0xff]
    %v636 = vld [vmem:[#allocation2 + $0x18] sm:$0xff]
    %637 = vrot.lane.b32.xlu0 %v633, 108
    %v638 = vpop.permute.xlu0 %637
    %639 = vrot.lane.b32.xlu0 %v634, 108
    %v640 = vpop.permute.xlu0 %639
    %641 = vrot.lane.b32.xlu0 %v635, 108
    %v642 = vpop.permute.xlu0 %641
    %643 = vrot.lane.b32.xlu0 %v636, 108
    %v644 = vpop.permute.xlu0 %643
    %v645 = vsel %vm239, %v642, %v644
    %v646 = vsel %vm239, %v640, %v642
    %v647 = vsel %vm239, %v638, %v640
    %648 = vst [vmem:[#allocation3 + $0x78] sm:$0xff] %v647
    %649 = vst [vmem:[#allocation3 + $0x80] sm:$0xff] %v646
    %650 = vst [vmem:[#allocation3 + $0x88] sm:$0xff] %v645
    %v651 = vld [vmem:[#allocation2] sm:$0xff]
    %v652 = vld [vmem:[#allocation2 + $0x8] sm:$0xff]
    %v653 = vld [vmem:[#allocation2 + $0x10] sm:$0xff]
    %v654 = vld [vmem:[#allocation2 + $0x18] sm:$0xff]
    %655 = vrot.lane.b32.xlu0 %v651, 92
    %v656 = vpop.permute.xlu0 %655
    %657 = vrot.lane.b32.xlu0 %v652, 92
    %v658 = vpop.permute.xlu0 %657
    %659 = vrot.lane.b32.xlu0 %v653, 92
    %v660 = vpop.permute.xlu0 %659
    %661 = vrot.lane.b32.xlu0 %v654, 92
    %v662 = vpop.permute.xlu0 %661
    %v663 = vsel %vm258, %v660, %v662
    %v664 = vsel %vm258, %v658, %v660
    %v665 = vsel %vm258, %v656, %v658
    %666 = vst [vmem:[#allocation3 + $0x90] sm:$0xff] %v665
    %667 = vst [vmem:[#allocation3 + $0x98] sm:$0xff] %v664
    %668 = vst [vmem:[#allocation3 + $0xa0] sm:$0xff] %v663
    %v669 = vld [vmem:[#allocation2] sm:$0xff]
    %v670 = vld [vmem:[#allocation2 + $0x8] sm:$0xff]
    %v671 = vld [vmem:[#allocation2 + $0x10] sm:$0xff]
    %v672 = vld [vmem:[#allocation2 + $0x18] sm:$0xff]
    %673 = vrot.lane.b32.xlu0 %v669, 91
    %v674 = vpop.permute.xlu0 %673
    %675 = vrot.lane.b32.xlu0 %v670, 91
    %v676 = vpop.permute.xlu0 %675
    %677 = vrot.lane.b32.xlu0 %v671, 91
    %v678 = vpop.permute.xlu0 %677
    %679 = vrot.lane.b32.xlu0 %v672, 91
    %v680 = vpop.permute.xlu0 %679
    %v681 = vsel %vm277, %v678, %v680
    %v682 = vsel %vm277, %v676, %v678
    %v683 = vsel %vm277, %v674, %v676
    %684 = vst [vmem:[#allocation3 + $0xa8] sm:$0xff] %v683
    %685 = vst [vmem:[#allocation3 + $0xb0] sm:$0xff] %v682
    %686 = vst [vmem:[#allocation3 + $0xb8] sm:$0xff] %v681
    %v687 = vld [vmem:[#allocation2] sm:$0xff]
    %v688 = vld [vmem:[#allocation2 + $0x8] sm:$0xff]
    %v689 = vld [vmem:[#allocation2 + $0x10] sm:$0xff]
    %v690 = vld [vmem:[#allocation2 + $0x18] sm:$0xff]
    %691 = vrot.lane.b32.xlu0 %v687, 90
    %v692 = vpop.permute.xlu0 %691
    %693 = vrot.lane.b32.xlu0 %v688, 90
    %v694 = vpop.permute.xlu0 %693
    %695 = vrot.lane.b32.xlu0 %v689, 90
    %v696 = vpop.permute.xlu0 %695
    %697 = vrot.lane.b32.xlu0 %v690, 90
    %v698 = vpop.permute.xlu0 %697
    %v699 = vsel %vm296, %v696, %v698
    %v700 = vsel %vm296, %v694, %v696
    %v701 = vsel %vm296, %v692, %v694
    %702 = vst [vmem:[#allocation3 + $0xc0] sm:$0xff] %v701
    %703 = vst [vmem:[#allocation3 + $0xc8] sm:$0xff] %v700
    %704 = vst [vmem:[#allocation3 + $0xd0] sm:$0xff] %v699
    %v705 = vld [vmem:[#allocation7] sm:$0xff]
    %v706 = vld [vmem:[#allocation3] sm:$0xff]
    %v707 = vld [vmem:[#allocation3 + $0x8] sm:$0xff]
    %v708 = vld [vmem:[#allocation3 + $0x10] sm:$0xff]
    %v709 = vld [vmem:[#allocation3 + $0x18] sm:$0xff]
    %v710 = vld [vmem:[#allocation3 + $0x20] sm:$0xff]
    %v711 = vld [vmem:[#allocation3 + $0x28] sm:$0xff]
    %v712 = vld [vmem:[#allocation3 + $0x30] sm:$0xff]
    %v713 = vld [vmem:[#allocation3 + $0x38] sm:$0xff]
    %v714 = vld [vmem:[#allocation3 + $0x40] sm:$0xff]
    %v715 = vld [vmem:[#allocation3 + $0x48] sm:$0xff]
    %v716 = vld [vmem:[#allocation3 + $0x50] sm:$0xff]
    %v717 = vld [vmem:[#allocation3 + $0x58] sm:$0xff]
    %v718 = vld [vmem:[#allocation3 + $0x60] sm:$0xff]
    %v719 = vld [vmem:[#allocation3 + $0x68] sm:$0xff]
    %v720 = vld [vmem:[#allocation3 + $0x70] sm:$0xff]
    %v721 = vld [vmem:[#allocation3 + $0x78] sm:$0xff]
    %v722 = vld [vmem:[#allocation3 + $0x80] sm:$0xff]
    %v723 = vld [vmem:[#allocation3 + $0x88] sm:$0xff]
    %v724 = vld [vmem:[#allocation3 + $0x90] sm:$0xff]
    %v725 = vld [vmem:[#allocation3 + $0x98] sm:$0xff]
    %v726 = vld [vmem:[#allocation3 + $0xa0] sm:$0xff]
    %v727 = vld [vmem:[#allocation3 + $0xa8] sm:$0xff]
    %v728 = vld [vmem:[#allocation3 + $0xb0] sm:$0xff]
    %v729 = vld [vmem:[#allocation3 + $0xb8] sm:$0xff]
    %v730 = vld [vmem:[#allocation3 + $0xc0] sm:$0xff]
    %v731 = vld [vmem:[#allocation3 + $0xc8] sm:$0xff]
    %v732 = vld [vmem:[#allocation3 + $0xd0] sm:$0xff]
    %v733 = vld [vmem:[#allocation9] sm:$0xff]
    %735 = vset.pattern.permute.xlu0 0
    %736 = vperm.xlu0 %735, %v733
    %v737 = vpop.permute.xlu0 %736
    %v740 = vsel %vm337, %v705, 0
    %742 = vmatprep.subr.mxu0 %v707
    %743 = vmatpush1.msra.mxu0 %v706
    %744 = vmatprep.subr.mxu0 %v710
    %745 = vmatpush1.msra.mxu0 %v709
    %746 = vmatprep.subr.mxu0 %v713
    %747 = vmatpush1.msra.mxu0 %v712
    %748 = vmatprep.subr.mxu0 %v716
    %749 = vmatpush1.msra.mxu0 %v715
    %750 = vmatprep.subr.mxu0 %v719
    %751 = vmatpush1.msra.mxu0 %v718
    %752 = vmatprep.subr.mxu0 %v722
    %753 = vmatpush1.msra.mxu0 %v721
    %754 = vmatprep.subr.mxu0 %v725
    %755 = vmatpush1.msra.mxu0 %v724
    %756 = vmatprep.subr.mxu0 %v728
    %757 = vmatpush1.msra.mxu0 %v727
    %758 = vmatprep.subr.mxu0 %v731
    %759 = vmatpush1.msra.mxu0 %v730
    %760 = vmatprep.subr.mxu0 0.0
    %761 = vmatpush1.msra.mxu0 0.0
    %762 = vmatprep.subr.mxu0 0.0
    %763 = vmatpush1.msra.mxu0 0.0
    %764 = vmatprep.subr.mxu0 0.0
    %765 = vmatpush1.msra.mxu0 0.0
    %766 = vmatprep.subr.mxu0 0.0
    %767 = vmatpush1.msra.mxu0 0.0
    %768 = vmatprep.subr.mxu0 0.0
    %769 = vmatpush1.msra.mxu0 0.0
    %770 = vmatprep.subr.mxu0 0.0
    %771 = vmatpush1.msra.mxu0 0.0
    %772 = vmatprep.subr.mxu0 0.0
    %773 = vmatpush1.msra.mxu0 0.0
    %774 = vmatprep.subr.mxu0 0.0
    %775 = vmatpush1.msra.mxu0 0.0
    %776 = vmatprep.subr.mxu0 0.0
    %777 = vmatpush1.msra.mxu0 0.0
    %778 = vmatprep.subr.mxu0 0.0
    %779 = vmatpush1.msra.mxu0 0.0
    %780 = vmatprep.subr.mxu0 0.0
    %781 = vmatpush1.msra.mxu0 0.0
    %782 = vmatprep.subr.mxu0 0.0
    %783 = vmatpush1.msra.mxu0 0.0
    %784 = vmatprep.subr.mxu0 0.0
    %785 = vmatpush1.msra.mxu0 0.0
    %786 = vmatprep.subr.mxu0 0.0
    %787 = vmatpush1.msra.mxu0 0.0
    %788 = vmatprep.subr.mxu0 0.0
    %789 = vmatpush1.msra.mxu0 0.0
    %790 = vmatprep.subr.mxu0 0.0
    %791 = vmatpush1.msra.mxu0 0.0
    %792 = vmatprep.subr.mxu0 0.0
    %793 = vmatpush1.msra.mxu0 0.0
    %794 = vmatprep.subr.mxu0 0.0
    %795 = vmatpush1.msra.mxu0 0.0
    %796 = vmatprep.subr.mxu0 0.0
    %797 = vmatpush1.msra.mxu0 0.0
    %798 = vmatprep.subr.mxu0 0.0
    %799 = vmatpush1.msra.mxu0 0.0
    %800 = vmatprep.subr.mxu0 0.0
    %801 = vmatpush1.msra.mxu0 0.0
    %802 = vmatprep.subr.mxu0 0.0
    %803 = vmatpush1.msra.mxu0 0.0
    %804 = vmatprep.subr.mxu0 0.0
    %805 = vmatpush1.msra.mxu0 0.0
    %806 = vmatprep.mubr.f32.mxu0 0.0
    %807 = vmatmul.mubr.f32.gmra.mrb[0].mxu0 %v740
    %v808 = vpop.f32.mrb[0].mxu0
    %v809 = vadd.f32 %v737, %v808
    %v810 = vpop.f32.mrb[0].mxu0
    %v811 = vadd.f32 %v737, %v810
    %812 = vdwg.mxu0
    %813 = vmatprep.subr.mxu0 0.0
    %814 = vmatpush1.msra.mxu0 %v708
    %815 = vmatprep.subr.mxu0 0.0
    %816 = vmatpush1.msra.mxu0 %v711
    %817 = vmatprep.subr.mxu0 0.0
    %818 = vmatpush1.msra.mxu0 %v714
    %819 = vmatprep.subr.mxu0 0.0
    %820 = vmatpush1.msra.mxu0 %v717
    %821 = vmatprep.subr.mxu0 0.0
    %822 = vmatpush1.msra.mxu0 %v720
    %823 = vmatprep.subr.mxu0 0.0
    %824 = vmatpush1.msra.mxu0 %v723
    %825 = vmatprep.subr.mxu0 0.0
    %826 = vmatpush1.msra.mxu0 %v726
    %827 = vmatprep.subr.mxu0 0.0
    %828 = vmatpush1.msra.mxu0 %v729
    %829 = vmatprep.subr.mxu0 0.0
    %830 = vmatpush1.msra.mxu0 %v732
    %831 = vmatprep.subr.mxu0 0.0
    %832 = vmatpush1.msra.mxu0 0.0
    %833 = vmatprep.subr.mxu0 0.0
    %834 = vmatpush1.msra.mxu0 0.0
    %835 = vmatprep.subr.mxu0 0.0
    %836 = vmatpush1.msra.mxu0 0.0
    %837 = vmatprep.subr.mxu0 0.0
    %838 = vmatpush1.msra.mxu0 0.0
    %839 = vmatprep.subr.mxu0 0.0
    %840 = vmatpush1.msra.mxu0 0.0
    %841 = vmatprep.subr.mxu0 0.0
    %842 = vmatpush1.msra.mxu0 0.0
    %843 = vmatprep.subr.mxu0 0.0
    %844 = vmatpush1.msra.mxu0 0.0
    %845 = vmatprep.subr.mxu0 0.0
    %846 = vmatpush1.msra.mxu0 0.0
    %847 = vmatprep.subr.mxu0 0.0
    %848 = vmatpush1.msra.mxu0 0.0
    %849 = vmatprep.subr.mxu0 0.0
    %850 = vmatpush1.msra.mxu0 0.0
    %851 = vmatprep.subr.mxu0 0.0
    %852 = vmatpush1.msra.mxu0 0.0
    %853 = vmatprep.subr.mxu0 0.0
    %854 = vmatpush1.msra.mxu0 0.0
    %855 = vmatprep.subr.mxu0 0.0
    %856 = vmatpush1.msra.mxu0 0.0
    %857 = vmatprep.subr.mxu0 0.0
    %858 = vmatpush1.msra.mxu0 0.0
    %859 = vmatprep.subr.mxu0 0.0
    %860 = vmatpush1.msra.mxu0 0.0
    %861 = vmatprep.subr.mxu0 0.0
    %862 = vmatpush1.msra.mxu0 0.0
    %863 = vmatprep.subr.mxu0 0.0
    %864 = vmatpush1.msra.mxu0 0.0
    %865 = vmatprep.subr.mxu0 0.0
    %866 = vmatpush1.msra.mxu0 0.0
    %867 = vmatprep.subr.mxu0 0.0
    %868 = vmatpush1.msra.mxu0 0.0
    %869 = vmatprep.subr.mxu0 0.0
    %870 = vmatpush1.msra.mxu0 0.0
    %871 = vmatprep.subr.mxu0 0.0
    %872 = vmatpush1.msra.mxu0 0.0
    %873 = vmatprep.subr.mxu0 0.0
    %874 = vmatpush1.msra.mxu0 0.0
    %875 = vmatprep.subr.mxu0 0.0
    %876 = vmatpush1.msra.mxu0 0.0
    %877 = vmatprep.mubr.f32.mxu0 0.0
    %878 = vmatmul.mubr.f32.gmra.mrb[0].mxu0 %v740
    %v879 = vpop.f32.mrb[0].mxu0
    %v880 = vadd.f32 %v737, %v879
    %v881 = vpop.f32.mrb[0].mxu0
    %882 = vdwg.mxu0
    %s883 = scalar_lea.vmem [#allocation10], 24
    %884 = vst [vmem:[%s883] sm:$0xff] %v809
    %885 = vst [vmem:[%s883 + $0x8] sm:$0xff] %v811
    %886 = vst [vmem:[%s883 + $0x10] sm:$0xff] %v880
    // Predicated region
    $region26: #{conv2d_pallas.1} parent=1 // pred_check
      _
    $region27: #{conv2d_pallas.1} parent=1 // pred_check_branch
      %888 = sbr.rel (0) target = $region29
    $region28: #{conv2d_pallas.1} parent=1 // pred_region
      %s890 = ssub.s32 768, 768
      %891 = vsyncadd [#allocation6], %s890
      %s892 = sshll.u32 [#allocation10], 4
      %s893 = int_to_ptr.vmem [resolvable:$true] %s892
      %898 = dma.vmem_to_hbm [thread:$0]  %s893, 768, %s3, [#allocation6], 384, 384, 24
    $region29: #{conv2d_pallas.1} parent=1 // pred_fallthru
      _
    // Predicated region
    $region30: #{conv2d_pallas.1} parent=1 // pred_check
      _
    $region31: #{conv2d_pallas.1} parent=1 // pred_check_branch
      %900 = sbr.rel (0) target = $region33
    $region32: #{conv2d_pallas.1} parent=1 // pred_region
      %901 = dma.done [#allocation6], 768
    $region33: #{conv2d_pallas.1} parent=1 // pred_fallthru
      _
    %902 = vsyncpa [#allocation5], 1
    %903 = vsyncpa [#allocation8], 1
    %904 = vsyncpa [#allocation6], 1

</llo_original>
